<compile_context>
chip_gen: v6e
topology: v6e:2x2x1
jax: 0.10.0
libtpu: 0.0.40
codegen_flags: <defaults>
</compile_context>

<pallas_src>
import functools

import jax
import jax.numpy as jnp
from jax.experimental import pallas as pl
from jax.experimental.pallas import tpu as pltpu

IN_FEATURES = 512
HIDDEN = 1024
OUT_FEATURES = 1
NEG_SLOPE = 0.01

PARAM_DTYPE = jnp.bfloat16   # matmul-weight storage dtype
BIAS_DTYPE = jnp.float32


def _discriminator1_kernel(x_ref, w1_ref, b1_ref, w2_ref, b2_ref, o_ref):
    # Layer 1 on the MXU: bf16 operands, f32 accumulation.
    x = x_ref[...].astype(w1_ref.dtype)                      # (TB, 512) bf16
    h = jnp.dot(x, w1_ref[...], preferred_element_type=jnp.float32)
    h = h + b1_ref[...]                                      # (TB, 1024) + (1, 1024)
    # LeakyReLU(0.01) on the VPU.
    h = jnp.where(h > 0, h, NEG_SLOPE * h)
    # Layer 2 (out_features == 1): VPU multiply + lane reduction keeps f32
    # precision and avoids an N=1 MXU matmul.
    w2_row = w2_ref[...].astype(jnp.float32)                 # (1, 1024)
    o = jnp.sum(h * w2_row, axis=-1, keepdims=True) + b2_ref[...]
    o_ref[...] = o.astype(o_ref.dtype)                       # (TB, 1)


@functools.partial(jax.jit, static_argnames=("block_b",))
def discriminator1_forward(x, w1, b1, w2, b2, *, block_b=512):
    """x: (B, 512) f32 -> (B, 1) f32.

    w1: (512, 1024) bf16, b1: (1, 1024) f32, w2: (1, 1024) bf16, b2: (1, 1) f32.
    """
    B = x.shape[0]
    tb = min(block_b, B)
    # Keep the batch tile sublane-aligned unless it equals the full batch.
    if tb % 8 != 0 and tb != B:
        tb = max(8, (tb // 8) * 8)
    pad = (-B) % tb
    if pad:
        x = jnp.pad(x, ((0, pad), (0, 0)))
    bp = B + pad
    grid = (bp // tb,)

    out = pl.pallas_call(
        _discriminator1_kernel,
        out_shape=jax.ShapeDtypeStruct((bp, OUT_FEATURES), jnp.float32),
        grid_spec=pltpu.PrefetchScalarGridSpec(
            num_scalar_prefetch=0,
            grid=grid,
            in_specs=[
                # x: tiled over batch, double-buffered by the pipeline.
                pl.BlockSpec((tb, IN_FEATURES), lambda i: (i, 0)),
                # Weights / biases: constant index map -> fetched once, resident.
                pl.BlockSpec((IN_FEATURES, HIDDEN), lambda i: (0, 0)),
                pl.BlockSpec((1, HIDDEN), lambda i: (0, 0)),
                pl.BlockSpec((1, HIDDEN), lambda i: (0, 0)),
                pl.BlockSpec((1, OUT_FEATURES), lambda i: (0, 0)),
            ],
            out_specs=pl.BlockSpec((tb, OUT_FEATURES), lambda i: (i, 0)),
        ),
        compiler_params=pltpu.CompilerParams(
            dimension_semantics=("parallel",),   # batch tiles are independent
        ),
    )(x, w1, b1, w2, b2)
    if pad:
        out = out[:B]
    return out


def init_params(key):
    """Kaiming-uniform-like init (as in nn.Linear). Weights bf16, biases f32."""
    k1, k2, k3, k4 = jax.random.split(key, 4)
    bound1 = 1.0 / (IN_FEATURES ** 0.5)
    w1 = jax.random.uniform(k1, (IN_FEATURES, HIDDEN), jnp.float32,
                            minval=-bound1, maxval=bound1).astype(PARAM_DTYPE)
    b1 = jax.random.uniform(k2, (1, HIDDEN), BIAS_DTYPE,
                            minval=-bound1, maxval=bound1)
    bound2 = 1.0 / (HIDDEN ** 0.5)
    w2 = jax.random.uniform(k3, (1, HIDDEN), jnp.float32,
                            minval=-bound2, maxval=bound2).astype(PARAM_DTYPE)
    b2 = jax.random.uniform(k4, (1, OUT_FEATURES), BIAS_DTYPE,
                            minval=-bound2, maxval=bound2)
    return w1, b1, w2, b2


def _reference_forward(x, w1, b1, w2, b2):
    # Same bf16 weight storage / f32 accumulation as the kernel.
    h = jnp.dot(x.astype(w1.dtype), w1, preferred_element_type=jnp.float32) + b1
    h = jnp.where(h > 0, h, NEG_SLOPE * h)
    return jnp.dot(h, w2.astype(jnp.float32).T,
                   preferred_element_type=jnp.float32) + b2


if __name__ == "__main__":
    key = jax.random.PRNGKey(0)
    k_x, k_p = jax.random.split(key)
    w1, b1, w2, b2 = init_params(k_p)

    # Test 1: single-tile path (whole batch in one grid step).
    B1 = 8
    x1 = jax.random.normal(k_x, (B1, IN_FEATURES), jnp.float32)
    out1 = jax.block_until_ready(discriminator1_forward(x1, w1, b1, w2, b2))
    ref1 = _reference_forward(x1, w1, b1, w2, b2)
    assert out1.shape == (B1, OUT_FEATURES)
    assert jnp.allclose(out1, ref1, atol=1e-2, rtol=1e-2), (
        jnp.max(jnp.abs(out1 - ref1)))

    # Test 2: multi-tile path with padding (grid of 3, last tile padded).
    B2 = 20
    x2 = jax.random.normal(jax.random.fold_in(k_x, 1),
                           (B2, IN_FEATURES), jnp.float32)
    out2 = jax.block_until_ready(
        discriminator1_forward(x2, w1, b1, w2, b2, block_b=8))
    ref2 = _reference_forward(x2, w1, b1, w2, b2)
    assert out2.shape == (B2, OUT_FEATURES)
    assert jnp.allclose(out2, ref2, atol=1e-2, rtol=1e-2), (
        jnp.max(jnp.abs(out2 - ref2)))

    print("KERNEL_OK")
</pallas_src>

<mosaic_0001>
module attributes {stable_mosaic.version = 11 : i64} {
  func.func @_discriminator1_kernel(%arg0: i32, %arg1: memref<8x512xf32, #tpu.memory_space<vmem>>, %arg2: memref<512x1024xbf16, #tpu.memory_space<vmem>>, %arg3: memref<1x1024xf32, #tpu.memory_space<vmem>>, %arg4: memref<1x1024xbf16, #tpu.memory_space<vmem>>, %arg5: memref<1x1xf32, #tpu.memory_space<vmem>>, %arg6: memref<8x1xf32, #tpu.memory_space<vmem>>) attributes {dimension_semantics = [#tpu.dimension_semantics<parallel>], iteration_bounds = array<i64: 1>, scalar_prefetch = 0 : i64, scratch_operands = 0 : i64, tpu.core_type = #tpu.core_type<tc>, window_params = [{transform_indices = @transform_0, window_bounds = array<i64: 8, 512>}, {pipeline_mode = #tpu.pipeline_mode<synchronous>, transform_indices = @transform_1, window_bounds = array<i64: 512, 1024>}, {pipeline_mode = #tpu.pipeline_mode<synchronous>, transform_indices = @transform_2, window_bounds = array<i64: 1, 1024>}, {pipeline_mode = #tpu.pipeline_mode<synchronous>, transform_indices = @transform_3, window_bounds = array<i64: 1, 1024>}, {pipeline_mode = #tpu.pipeline_mode<synchronous>, transform_indices = @transform_4, window_bounds = array<i64: 1, 1>}, {transform_indices = @transform_5, window_bounds = array<i64: 8, 1>}]} {
    %c0 = arith.constant 0 : index
    %c0_0 = arith.constant 0 : index
    %0 = vector.load %arg1[%c0, %c0_0] : memref<8x512xf32, #tpu.memory_space<vmem>>, vector<8x512xf32>
    %1 = arith.truncf %0 : vector<8x512xf32> to vector<8x512xbf16>
    %c0_1 = arith.constant 0 : index
    %c0_2 = arith.constant 0 : index
    %2 = vector.load %arg2[%c0_1, %c0_2] : memref<512x1024xbf16, #tpu.memory_space<vmem>>, vector<512x1024xbf16>
    %cst = arith.constant dense<0.000000e+00> : vector<8x1024xf32>
    %3 = tpu.matmul %1, %2, %cst {dimension_numbers = #tpu.dot_dimension_numbers<[1], [0], [0], [1], [0, 0, 1, 1], [], []>} : vector<8x512xbf16>, vector<512x1024xbf16>, vector<8x1024xf32> -> vector<8x1024xf32>
    %c0_3 = arith.constant 0 : index
    %c0_4 = arith.constant 0 : index
    %4 = vector.load %arg3[%c0_3, %c0_4] : memref<1x1024xf32, #tpu.memory_space<vmem>>, vector<1x1024xf32>
    %5 = vector.broadcast %4 : vector<1x1024xf32> to vector<8x1024xf32>
    %6 = arith.addf %3, %5 : vector<8x1024xf32>
    %cst_5 = arith.constant 0.000000e+00 : f32
    %7 = vector.broadcast %cst_5 : f32 to vector<8x1024xf32>
    %8 = arith.cmpf ogt, %6, %7 : vector<8x1024xf32>
    %cst_6 = arith.constant 0.00999999977 : f32
    %9 = vector.broadcast %cst_6 : f32 to vector<8x1024xf32>
    %10 = arith.mulf %9, %6 : vector<8x1024xf32>
    %11 = arith.select %8, %6, %10 : vector<8x1024xi1>, vector<8x1024xf32>
    %c0_7 = arith.constant 0 : index
    %c0_8 = arith.constant 0 : index
    %12 = vector.load %arg4[%c0_7, %c0_8] : memref<1x1024xbf16, #tpu.memory_space<vmem>>, vector<1x1024xbf16>
    %13 = arith.extf %12 : vector<1x1024xbf16> to vector<1x1024xf32>
    %14 = vector.broadcast %13 : vector<1x1024xf32> to vector<8x1024xf32>
    %15 = arith.mulf %11, %14 : vector<8x1024xf32>
    %cst_9 = arith.constant dense<0.000000e+00> : vector<8xf32>
    %16 = vector.multi_reduction <add>, %15, %cst_9 [1] : vector<8x1024xf32> to vector<8xf32>
    %17 = vector.shape_cast %16 : vector<8xf32> to vector<8x1xf32>
    %c0_10 = arith.constant 0 : index
    %c0_11 = arith.constant 0 : index
    %18 = vector.load %arg5[%c0_10, %c0_11] : memref<1x1xf32, #tpu.memory_space<vmem>>, vector<1x1xf32>
    %19 = vector.broadcast %18 : vector<1x1xf32> to vector<8x1xf32>
    %20 = arith.addf %17, %19 : vector<8x1xf32>
    %c0_12 = arith.constant 0 : index
    %c0_13 = arith.constant 0 : index
    %21 = vector.load %arg6[%c0_12, %c0_13] : memref<8x1xf32, #tpu.memory_space<vmem>>, vector<8x1xf32>
    tpu.vector_store %arg6[%c0_12, %c0_13], %20 {strides = array<i32>} : memref<8x1xf32, #tpu.memory_space<vmem>>, vector<8x1xf32>,
    return
  }
  func.func @transform_0(%arg0: i32) -> (i32, i32) {
    %c0_i32 = arith.constant 0 : i32
    %c0_i32_0 = arith.constant 0 : i32
    return %arg0, %c0_i32 : i32, i32
  }
  func.func @transform_1(%arg0: i32) -> (i32, i32) {
    %c0_i32 = arith.constant 0 : i32
    %c0_i32_0 = arith.constant 0 : i32
    %c0_i32_1 = arith.constant 0 : i32
    return %c0_i32, %c0_i32_0 : i32, i32
  }
  func.func @transform_2(%arg0: i32) -> (i32, i32) {
    %c0_i32 = arith.constant 0 : i32
    %c0_i32_0 = arith.constant 0 : i32
    %c0_i32_1 = arith.constant 0 : i32
    return %c0_i32, %c0_i32_0 : i32, i32
  }
  func.func @transform_3(%arg0: i32) -> (i32, i32) {
    %c0_i32 = arith.constant 0 : i32
    %c0_i32_0 = arith.constant 0 : i32
    %c0_i32_1 = arith.constant 0 : i32
    return %c0_i32, %c0_i32_0 : i32, i32
  }
  func.func @transform_4(%arg0: i32) -> (i32, i32) {
    %c0_i32 = arith.constant 0 : i32
    %c0_i32_0 = arith.constant 0 : i32
    %c0_i32_1 = arith.constant 0 : i32
    return %c0_i32, %c0_i32_0 : i32, i32
  }
  func.func @transform_5(%arg0: i32) -> (i32, i32) {
    %c0_i32 = arith.constant 0 : i32
    %c0_i32_0 = arith.constant 0 : i32
    return %arg0, %c0_i32 : i32, i32
  }
}

</mosaic_0001>

<llo_original>
// kernel: discriminator1_forward.1
$region0: #{discriminator1_forward.1}
  #allocation0 [shape = 'u32[]', space=smem, size = 0x4, offset = 0x4, fixed_abs, tag = 'smem constant byte address 0x4 - core index']
  #allocation1 [shape = 'u32[144,128]{1,0:T(1,128)}', space=vmem, size = 0x12000, scoped, tag = 'internal scratch']
  #allocation2 [shape = 'f32[1,1]{1,0:T(1,128)S(1)}', space=vmem, size = 0x200, scoped, tag = 'scoped memory for discriminator1_forward.1']
  %s0 = inlined_call_operand.hbm [shape: f32[8,512], index: 0, kind: input, shape index: {}]
  %s1 = inlined_call_operand.hbm [shape: bf16[512,1024], index: 1, kind: input, shape index: {}]
  %s2 = inlined_call_operand.hbm [shape: f32[1,1024], index: 2, kind: input, shape index: {}]
  %s3 = inlined_call_operand.hbm [shape: bf16[1,1024], index: 3, kind: input, shape index: {}]
  %s4 = inlined_call_operand.<no memory space> [shape: f32[1,1], index: 4, kind: input, shape index: {}]
  %s5 = inlined_call_operand.vmem [shape: f32[8,1], index: 5, kind: output, shape index: {}]
  %s6 = sld [smem:[#allocation0]]
  $region46: #{discriminator1_forward.1} parent=0
    _
  %s8 = ssub.s32 1, %s6
  %s9 = scalar_select 0, %s8, %s6
  %v10 = vstv %s4
  %11 = vst [vmem:[#allocation2] sm:$0x1] %v10
  $region1: #{discriminator1_forward.1} parent=0
    #allocation3 [shape = 'u8[16384]{0}', space=vmem, size = 0x4000, scoped, tag = 'input window, operand 0, single buffered']
    #allocation4 [shape = 's32[1]{0}', space=sflag, size = 0x4, scoped, tag = 'scoped memory for discriminator1_forward.1']
    #allocation5 [shape = 'u8[1048576]{0}', space=vmem, size = 0x100000, scoped, tag = 'input window, operand 1, single buffered']
    #allocation6 [shape = 's32[1]{0}', space=sflag, size = 0x4, scoped, tag = 'scoped memory for discriminator1_forward.1']
    #allocation7 [shape = 'u8[4096]{0}', space=vmem, size = 0x1000, scoped, tag = 'input window, operand 2, single buffered']
    #allocation8 [shape = 'u8[4096]{0}', space=vmem, size = 0x1000, scoped, tag = 'input window, operand 3, single buffered']
    #allocation9 [shape = 's32[1]{0}', space=sflag, size = 0x4, scoped, tag = 'scoped memory for discriminator1_forward.1']
    %12 = vsyncpa [#allocation4], 0
    %13 = vsyncpa [#allocation6], 0
    %14 = vsyncpa [#allocation9], 0
    // Predicated region
    $region2: #{discriminator1_forward.1} parent=1 // pred_check
      _
    $region3: #{discriminator1_forward.1} parent=1 // pred_check_branch
      %16 = sbr.rel (0) target = $region5
    $region4: #{discriminator1_forward.1} parent=1 // pred_region
      %s18 = ssub.s32 512, 512
      %19 = vsyncadd [#allocation4], %s18
      %s21 = sshll.u32 [#allocation3], 4
      %s22 = int_to_ptr.vmem [resolvable:$true] %s21
      %24 = dma.hbm_to_vmem [thread:$0]  %s0, 512, %s22, [#allocation4]
    $region5: #{discriminator1_forward.1} parent=1 // pred_fallthru
      _
    // Predicated region
    $region6: #{discriminator1_forward.1} parent=1 // pred_check
      _
    $region7: #{discriminator1_forward.1} parent=1 // pred_check_branch
      %26 = sbr.rel (0) target = $region9
    $region8: #{discriminator1_forward.1} parent=1 // pred_region
      %s28 = ssub.s32 32768, 32768
      %29 = vsyncadd [#allocation6], %s28
      %s30 = sshll.u32 [#allocation5], 4
      %s31 = int_to_ptr.vmem [resolvable:$true] %s30
      %36 = dma.hbm_to_vmem [thread:$0]  %s1, 32768, %s31, [#allocation6], 512, 512, 32
    $region9: #{discriminator1_forward.1} parent=1 // pred_fallthru
      _
    // Predicated region
    $region10: #{discriminator1_forward.1} parent=1 // pred_check
      _
    $region11: #{discriminator1_forward.1} parent=1 // pred_check_branch
      %38 = sbr.rel (0) target = $region13
    $region12: #{discriminator1_forward.1} parent=1 // pred_region
      %s40 = ssub.s32 128, 128
      %41 = vsyncadd [#allocation6], %s40
      %s43 = sshll.u32 [#allocation7], 4
      %s44 = int_to_ptr.vmem [resolvable:$true] %s43
      %46 = dma.hbm_to_vmem [thread:$0]  %s2, 128, %s44, [#allocation6]
    $region13: #{discriminator1_forward.1} parent=1 // pred_fallthru
      _
    // Predicated region
    $region14: #{discriminator1_forward.1} parent=1 // pred_check
      _
    $region15: #{discriminator1_forward.1} parent=1 // pred_check_branch
      %48 = sbr.rel (0) target = $region17
    $region16: #{discriminator1_forward.1} parent=1 // pred_region
      %s50 = ssub.s32 128, 128
      %51 = vsyncadd [#allocation9], %s50
      %s53 = sshll.u32 [#allocation8], 4
      %s54 = int_to_ptr.vmem [resolvable:$true] %s53
      %56 = dma.hbm_to_vmem [thread:$0]  %s3, 128, %s54, [#allocation9]
    $region17: #{discriminator1_forward.1} parent=1 // pred_fallthru
      _
    // Predicated region
    $region18: #{discriminator1_forward.1} parent=1 // pred_check
      _
    $region19: #{discriminator1_forward.1} parent=1 // pred_check_branch
      %58 = sbr.rel (0) target = $region21
    $region20: #{discriminator1_forward.1} parent=1 // pred_region
      _
    $region21: #{discriminator1_forward.1} parent=1 // pred_fallthru
      _
    // Predicated region
    $region22: #{discriminator1_forward.1} parent=1 // pred_check
      _
    $region23: #{discriminator1_forward.1} parent=1 // pred_check_branch
      %60 = sbr.rel (0) target = $region25
    $region24: #{discriminator1_forward.1} parent=1 // pred_region
      %61 = dma.done [#allocation4], 512
    $region25: #{discriminator1_forward.1} parent=1 // pred_fallthru
      _
    // Predicated region
    $region26: #{discriminator1_forward.1} parent=1 // pred_check
      _
    $region27: #{discriminator1_forward.1} parent=1 // pred_check_branch
      %63 = sbr.rel (0) target = $region29
    $region28: #{discriminator1_forward.1} parent=1 // pred_region
      %64 = dma.done [#allocation6], 32768
    $region29: #{discriminator1_forward.1} parent=1 // pred_fallthru
      _
    // Predicated region
    $region30: #{discriminator1_forward.1} parent=1 // pred_check
      _
    $region31: #{discriminator1_forward.1} parent=1 // pred_check_branch
      %66 = sbr.rel (0) target = $region33
    $region32: #{discriminator1_forward.1} parent=1 // pred_region
      %67 = dma.done [#allocation6], 128
    $region33: #{discriminator1_forward.1} parent=1 // pred_fallthru
      _
    // Predicated region
    $region34: #{discriminator1_forward.1} parent=1 // pred_check
      _
    $region35: #{discriminator1_forward.1} parent=1 // pred_check_branch
      %69 = sbr.rel (0) target = $region37
    $region36: #{discriminator1_forward.1} parent=1 // pred_region
      %70 = dma.done [#allocation9], 128
    $region37: #{discriminator1_forward.1} parent=1 // pred_fallthru
      _
    %v71 = vld [vmem:[#allocation3] sm:$0xff]
    %v72 = vld [vmem:[#allocation3 + $0x8] sm:$0xff]
    %v73 = vld [vmem:[#allocation3 + $0x10] sm:$0xff]
    %v74 = vld [vmem:[#allocation3 + $0x18] sm:$0xff]
    %v75 = vpack.c.bf16 %v71, %v71
    %v76 = vpack.c.bf16 %v72, %v72
    %v77 = vpack.c.bf16 %v73, %v73
    %v78 = vpack.c.bf16 %v74, %v74
    %v79 = vld [vmem:[#allocation5] sm:$0xff]
    %v80 = vld [vmem:[#allocation5 + $0x8] sm:$0xff]
    %v81 = vld [vmem:[#allocation5 + $0x10] sm:$0xff]
    %v82 = vld [vmem:[#allocation5 + $0x18] sm:$0xff]
    %v83 = vld [vmem:[#allocation5 + $0x20] sm:$0xff]
    %v84 = vld [vmem:[#allocation5 + $0x28] sm:$0xff]
    %v85 = vld [vmem:[#allocation5 + $0x30] sm:$0xff]
    %v86 = vld [vmem:[#allocation5 + $0x38] sm:$0xff]
    %v87 = vld [vmem:[#allocation5 + $0x40] sm:$0xff]
    %v88 = vld [vmem:[#allocation5 + $0x48] sm:$0xff]
    %v89 = vld [vmem:[#allocation5 + $0x50] sm:$0xff]
    %v90 = vld [vmem:[#allocation5 + $0x58] sm:$0xff]
    %v91 = vld [vmem:[#allocation5 + $0x60] sm:$0xff]
    %v92 = vld [vmem:[#allocation5 + $0x68] sm:$0xff]
    %v93 = vld [vmem:[#allocation5 + $0x70] sm:$0xff]
    %v94 = vld [vmem:[#allocation5 + $0x78] sm:$0xff]
    %v95 = vld [vmem:[#allocation5 + $0x80] sm:$0xff]
    %v96 = vld [vmem:[#allocation5 + $0x88] sm:$0xff]
    %v97 = vld [vmem:[#allocation5 + $0x90] sm:$0xff]
    %v98 = vld [vmem:[#allocation5 + $0x98] sm:$0xff]
    %v99 = vld [vmem:[#allocation5 + $0xa0] sm:$0xff]
    %v100 = vld [vmem:[#allocation5 + $0xa8] sm:$0xff]
    %v101 = vld [vmem:[#allocation5 + $0xb0] sm:$0xff]
    %v102 = vld [vmem:[#allocation5 + $0xb8] sm:$0xff]
    %v103 = vld [vmem:[#allocation5 + $0xc0] sm:$0xff]
    %v104 = vld [vmem:[#allocation5 + $0xc8] sm:$0xff]
    %v105 = vld [vmem:[#allocation5 + $0xd0] sm:$0xff]
    %v106 = vld [vmem:[#allocation5 + $0xd8] sm:$0xff]
    %v107 = vld [vmem:[#allocation5 + $0xe0] sm:$0xff]
    %v108 = vld [vmem:[#allocation5 + $0xe8] sm:$0xff]
    %v109 = vld [vmem:[#allocation5 + $0xf0] sm:$0xff]
    %v110 = vld [vmem:[#allocation5 + $0xf8] sm:$0xff]
    %v111 = vld [vmem:[#allocation5 + $0x100] sm:$0xff]
    %v112 = vld [vmem:[#allocation5 + $0x108] sm:$0xff]
    %v113 = vld [vmem:[#allocation5 + $0x110] sm:$0xff]
    %v114 = vld [vmem:[#allocation5 + $0x118] sm:$0xff]
    %v115 = vld [vmem:[#allocation5 + $0x120] sm:$0xff]
    %v116 = vld [vmem:[#allocation5 + $0x128] sm:$0xff]
    %v117 = vld [vmem:[#allocation5 + $0x130] sm:$0xff]
    %v118 = vld [vmem:[#allocation5 + $0x138] sm:$0xff]
    %v119 = vld [vmem:[#allocation5 + $0x140] sm:$0xff]
    %v120 = vld [vmem:[#allocation5 + $0x148] sm:$0xff]
    %v121 = vld [vmem:[#allocation5 + $0x150] sm:$0xff]
    %v122 = vld [vmem:[#allocation5 + $0x158] sm:$0xff]
    %v123 = vld [vmem:[#allocation5 + $0x160] sm:$0xff]
    %v124 = vld [vmem:[#allocation5 + $0x168] sm:$0xff]
    %v125 = vld [vmem:[#allocation5 + $0x170] sm:$0xff]
    %v126 = vld [vmem:[#allocation5 + $0x178] sm:$0xff]
    %v127 = vld [vmem:[#allocation5 + $0x180] sm:$0xff]
    %v128 = vld [vmem:[#allocation5 + $0x188] sm:$0xff]
    %v129 = vld [vmem:[#allocation5 + $0x190] sm:$0xff]
    %v130 = vld [vmem:[#allocation5 + $0x198] sm:$0xff]
    %v131 = vld [vmem:[#allocation5 + $0x1a0] sm:$0xff]
    %v132 = vld [vmem:[#allocation5 + $0x1a8] sm:$0xff]
    %v133 = vld [vmem:[#allocation5 + $0x1b0] sm:$0xff]
    %v134 = vld [vmem:[#allocation5 + $0x1b8] sm:$0xff]
    %v135 = vld [vmem:[#allocation5 + $0x1c0] sm:$0xff]
    %v136 = vld [vmem:[#allocation5 + $0x1c8] sm:$0xff]
    %v137 = vld [vmem:[#allocation5 + $0x1d0] sm:$0xff]
    %v138 = vld [vmem:[#allocation5 + $0x1d8] sm:$0xff]
    %v139 = vld [vmem:[#allocation5 + $0x1e0] sm:$0xff]
    %v140 = vld [vmem:[#allocation5 + $0x1e8] sm:$0xff]
    %v141 = vld [vmem:[#allocation5 + $0x1f0] sm:$0xff]
    %v142 = vld [vmem:[#allocation5 + $0x1f8] sm:$0xff]
    %v143 = vld [vmem:[#allocation5 + $0x200] sm:$0xff]
    %v144 = vld [vmem:[#allocation5 + $0x208] sm:$0xff]
    %v145 = vld [vmem:[#allocation5 + $0x210] sm:$0xff]
    %v146 = vld [vmem:[#allocation5 + $0x218] sm:$0xff]
    %v147 = vld [vmem:[#allocation5 + $0x220] sm:$0xff]
    %v148 = vld [vmem:[#allocation5 + $0x228] sm:$0xff]
    %v149 = vld [vmem:[#allocation5 + $0x230] sm:$0xff]
    %v150 = vld [vmem:[#allocation5 + $0x238] sm:$0xff]
    %v151 = vld [vmem:[#allocation5 + $0x240] sm:$0xff]
    %v152 = vld [vmem:[#allocation5 + $0x248] sm:$0xff]
    %v153 = vld [vmem:[#allocation5 + $0x250] sm:$0xff]
    %v154 = vld [vmem:[#allocation5 + $0x258] sm:$0xff]
    %v155 = vld [vmem:[#allocation5 + $0x260] sm:$0xff]
    %v156 = vld [vmem:[#allocation5 + $0x268] sm:$0xff]
    %v157 = vld [vmem:[#allocation5 + $0x270] sm:$0xff]
    %v158 = vld [vmem:[#allocation5 + $0x278] sm:$0xff]
    %v159 = vld [vmem:[#allocation5 + $0x280] sm:$0xff]
    %v160 = vld [vmem:[#allocation5 + $0x288] sm:$0xff]
    %v161 = vld [vmem:[#allocation5 + $0x290] sm:$0xff]
    %v162 = vld [vmem:[#allocation5 + $0x298] sm:$0xff]
    %v163 = vld [vmem:[#allocation5 + $0x2a0] sm:$0xff]
    %v164 = vld [vmem:[#allocation5 + $0x2a8] sm:$0xff]
    %v165 = vld [vmem:[#allocation5 + $0x2b0] sm:$0xff]
    %v166 = vld [vmem:[#allocation5 + $0x2b8] sm:$0xff]
    %v167 = vld [vmem:[#allocation5 + $0x2c0] sm:$0xff]
    %v168 = vld [vmem:[#allocation5 + $0x2c8] sm:$0xff]
    %v169 = vld [vmem:[#allocation5 + $0x2d0] sm:$0xff]
    %v170 = vld [vmem:[#allocation5 + $0x2d8] sm:$0xff]
    %v171 = vld [vmem:[#allocation5 + $0x2e0] sm:$0xff]
    %v172 = vld [vmem:[#allocation5 + $0x2e8] sm:$0xff]
    %v173 = vld [vmem:[#allocation5 + $0x2f0] sm:$0xff]
    %v174 = vld [vmem:[#allocation5 + $0x2f8] sm:$0xff]
    %v175 = vld [vmem:[#allocation5 + $0x300] sm:$0xff]
    %v176 = vld [vmem:[#allocation5 + $0x308] sm:$0xff]
    %v177 = vld [vmem:[#allocation5 + $0x310] sm:$0xff]
    %v178 = vld [vmem:[#allocation5 + $0x318] sm:$0xff]
    %v179 = vld [vmem:[#allocation5 + $0x320] sm:$0xff]
    %v180 = vld [vmem:[#allocation5 + $0x328] sm:$0xff]
    %v181 = vld [vmem:[#allocation5 + $0x330] sm:$0xff]
    %v182 = vld [vmem:[#allocation5 + $0x338] sm:$0xff]
    %v183 = vld [vmem:[#allocation5 + $0x340] sm:$0xff]
    %v184 = vld [vmem:[#allocation5 + $0x348] sm:$0xff]
    %v185 = vld [vmem:[#allocation5 + $0x350] sm:$0xff]
    %v186 = vld [vmem:[#allocation5 + $0x358] sm:$0xff]
    %v187 = vld [vmem:[#allocation5 + $0x360] sm:$0xff]
    %v188 = vld [vmem:[#allocation5 + $0x368] sm:$0xff]
    %v189 = vld [vmem:[#allocation5 + $0x370] sm:$0xff]
    %v190 = vld [vmem:[#allocation5 + $0x378] sm:$0xff]
    %v191 = vld [vmem:[#allocation5 + $0x380] sm:$0xff]
    %v192 = vld [vmem:[#allocation5 + $0x388] sm:$0xff]
    %v193 = vld [vmem:[#allocation5 + $0x390] sm:$0xff]
    %v194 = vld [vmem:[#allocation5 + $0x398] sm:$0xff]
    %v195 = vld [vmem:[#allocation5 + $0x3a0] sm:$0xff]
    %v196 = vld [vmem:[#allocation5 + $0x3a8] sm:$0xff]
    %v197 = vld [vmem:[#allocation5 + $0x3b0] sm:$0xff]
    %v198 = vld [vmem:[#allocation5 + $0x3b8] sm:$0xff]
    %v199 = vld [vmem:[#allocation5 + $0x3c0] sm:$0xff]
    %v200 = vld [vmem:[#allocation5 + $0x3c8] sm:$0xff]
    %v201 = vld [vmem:[#allocation5 + $0x3d0] sm:$0xff]
    %v202 = vld [vmem:[#allocation5 + $0x3d8] sm:$0xff]
    %v203 = vld [vmem:[#allocation5 + $0x3e0] sm:$0xff]
    %v204 = vld [vmem:[#allocation5 + $0x3e8] sm:$0xff]
    %v205 = vld [vmem:[#allocation5 + $0x3f0] sm:$0xff]
    %v206 = vld [vmem:[#allocation5 + $0x3f8] sm:$0xff]
    %v207 = vld [vmem:[#allocation5 + $0x400] sm:$0xff]
    %v208 = vld [vmem:[#allocation5 + $0x408] sm:$0xff]
    %v209 = vld [vmem:[#allocation5 + $0x410] sm:$0xff]
    %v210 = vld [vmem:[#allocation5 + $0x418] sm:$0xff]
    %v211 = vld [vmem:[#allocation5 + $0x420] sm:$0xff]
    %v212 = vld [vmem:[#allocation5 + $0x428] sm:$0xff]
    %v213 = vld [vmem:[#allocation5 + $0x430] sm:$0xff]
    %v214 = vld [vmem:[#allocation5 + $0x438] sm:$0xff]
    %v215 = vld [vmem:[#allocation5 + $0x440] sm:$0xff]
    %v216 = vld [vmem:[#allocation5 + $0x448] sm:$0xff]
    %v217 = vld [vmem:[#allocation5 + $0x450] sm:$0xff]
    %v218 = vld [vmem:[#allocation5 + $0x458] sm:$0xff]
    %v219 = vld [vmem:[#allocation5 + $0x460] sm:$0xff]
    %v220 = vld [vmem:[#allocation5 + $0x468] sm:$0xff]
    %v221 = vld [vmem:[#allocation5 + $0x470] sm:$0xff]
    %v222 = vld [vmem:[#allocation5 + $0x478] sm:$0xff]
    %v223 = vld [vmem:[#allocation5 + $0x480] sm:$0xff]
    %v224 = vld [vmem:[#allocation5 + $0x488] sm:$0xff]
    %v225 = vld [vmem:[#allocation5 + $0x490] sm:$0xff]
    %v226 = vld [vmem:[#allocation5 + $0x498] sm:$0xff]
    %v227 = vld [vmem:[#allocation5 + $0x4a0] sm:$0xff]
    %v228 = vld [vmem:[#allocation5 + $0x4a8] sm:$0xff]
    %v229 = vld [vmem:[#allocation5 + $0x4b0] sm:$0xff]
    %v230 = vld [vmem:[#allocation5 + $0x4b8] sm:$0xff]
    %v231 = vld [vmem:[#allocation5 + $0x4c0] sm:$0xff]
    %v232 = vld [vmem:[#allocation5 + $0x4c8] sm:$0xff]
    %v233 = vld [vmem:[#allocation5 + $0x4d0] sm:$0xff]
    %v234 = vld [vmem:[#allocation5 + $0x4d8] sm:$0xff]
    %v235 = vld [vmem:[#allocation5 + $0x4e0] sm:$0xff]
    %v236 = vld [vmem:[#allocation5 + $0x4e8] sm:$0xff]
    %v237 = vld [vmem:[#allocation5 + $0x4f0] sm:$0xff]
    %v238 = vld [vmem:[#allocation5 + $0x4f8] sm:$0xff]
    %v239 = vld [vmem:[#allocation5 + $0x500] sm:$0xff]
    %v240 = vld [vmem:[#allocation5 + $0x508] sm:$0xff]
    %v241 = vld [vmem:[#allocation5 + $0x510] sm:$0xff]
    %v242 = vld [vmem:[#allocation5 + $0x518] sm:$0xff]
    %v243 = vld [vmem:[#allocation5 + $0x520] sm:$0xff]
    %v244 = vld [vmem:[#allocation5 + $0x528] sm:$0xff]
    %v245 = vld [vmem:[#allocation5 + $0x530] sm:$0xff]
    %v246 = vld [vmem:[#allocation5 + $0x538] sm:$0xff]
    %v247 = vld [vmem:[#allocation5 + $0x540] sm:$0xff]
    %v248 = vld [vmem:[#allocation5 + $0x548] sm:$0xff]
    %v249 = vld [vmem:[#allocation5 + $0x550] sm:$0xff]
    %v250 = vld [vmem:[#allocation5 + $0x558] sm:$0xff]
    %v251 = vld [vmem:[#allocation5 + $0x560] sm:$0xff]
    %v252 = vld [vmem:[#allocation5 + $0x568] sm:$0xff]
    %v253 = vld [vmem:[#allocation5 + $0x570] sm:$0xff]
    %v254 = vld [vmem:[#allocation5 + $0x578] sm:$0xff]
    %v255 = vld [vmem:[#allocation5 + $0x580] sm:$0xff]
    %v256 = vld [vmem:[#allocation5 + $0x588] sm:$0xff]
    %v257 = vld [vmem:[#allocation5 + $0x590] sm:$0xff]
    %v258 = vld [vmem:[#allocation5 + $0x598] sm:$0xff]
    %v259 = vld [vmem:[#allocation5 + $0x5a0] sm:$0xff]
    %v260 = vld [vmem:[#allocation5 + $0x5a8] sm:$0xff]
    %v261 = vld [vmem:[#allocation5 + $0x5b0] sm:$0xff]
    %v262 = vld [vmem:[#allocation5 + $0x5b8] sm:$0xff]
    %v263 = vld [vmem:[#allocation5 + $0x5c0] sm:$0xff]
    %v264 = vld [vmem:[#allocation5 + $0x5c8] sm:$0xff]
    %v265 = vld [vmem:[#allocation5 + $0x5d0] sm:$0xff]
    %v266 = vld [vmem:[#allocation5 + $0x5d8] sm:$0xff]
    %v267 = vld [vmem:[#allocation5 + $0x5e0] sm:$0xff]
    %v268 = vld [vmem:[#allocation5 + $0x5e8] sm:$0xff]
    %v269 = vld [vmem:[#allocation5 + $0x5f0] sm:$0xff]
    %v270 = vld [vmem:[#allocation5 + $0x5f8] sm:$0xff]
    %v271 = vld [vmem:[#allocation5 + $0x600] sm:$0xff]
    %v272 = vld [vmem:[#allocation5 + $0x608] sm:$0xff]
    %v273 = vld [vmem:[#allocation5 + $0x610] sm:$0xff]
    %v274 = vld [vmem:[#allocation5 + $0x618] sm:$0xff]
    %v275 = vld [vmem:[#allocation5 + $0x620] sm:$0xff]
    %v276 = vld [vmem:[#allocation5 + $0x628] sm:$0xff]
    %v277 = vld [vmem:[#allocation5 + $0x630] sm:$0xff]
    %v278 = vld [vmem:[#allocation5 + $0x638] sm:$0xff]
    %v279 = vld [vmem:[#allocation5 + $0x640] sm:$0xff]
    %v280 = vld [vmem:[#allocation5 + $0x648] sm:$0xff]
    %v281 = vld [vmem:[#allocation5 + $0x650] sm:$0xff]
    %v282 = vld [vmem:[#allocation5 + $0x658] sm:$0xff]
    %v283 = vld [vmem:[#allocation5 + $0x660] sm:$0xff]
    %v284 = vld [vmem:[#allocation5 + $0x668] sm:$0xff]
    %v285 = vld [vmem:[#allocation5 + $0x670] sm:$0xff]
    %v286 = vld [vmem:[#allocation5 + $0x678] sm:$0xff]
    %v287 = vld [vmem:[#allocation5 + $0x680] sm:$0xff]
    %v288 = vld [vmem:[#allocation5 + $0x688] sm:$0xff]
    %v289 = vld [vmem:[#allocation5 + $0x690] sm:$0xff]
    %v290 = vld [vmem:[#allocation5 + $0x698] sm:$0xff]
    %v291 = vld [vmem:[#allocation5 + $0x6a0] sm:$0xff]
    %v292 = vld [vmem:[#allocation5 + $0x6a8] sm:$0xff]
    %v293 = vld [vmem:[#allocation5 + $0x6b0] sm:$0xff]
    %v294 = vld [vmem:[#allocation5 + $0x6b8] sm:$0xff]
    %v295 = vld [vmem:[#allocation5 + $0x6c0] sm:$0xff]
    %v296 = vld [vmem:[#allocation5 + $0x6c8] sm:$0xff]
    %v297 = vld [vmem:[#allocation5 + $0x6d0] sm:$0xff]
    %v298 = vld [vmem:[#allocation5 + $0x6d8] sm:$0xff]
    %v299 = vld [vmem:[#allocation5 + $0x6e0] sm:$0xff]
    %v300 = vld [vmem:[#allocation5 + $0x6e8] sm:$0xff]
    %v301 = vld [vmem:[#allocation5 + $0x6f0] sm:$0xff]
    %v302 = vld [vmem:[#allocation5 + $0x6f8] sm:$0xff]
    %v303 = vld [vmem:[#allocation5 + $0x700] sm:$0xff]
    %v304 = vld [vmem:[#allocation5 + $0x708] sm:$0xff]
    %v305 = vld [vmem:[#allocation5 + $0x710] sm:$0xff]
    %v306 = vld [vmem:[#allocation5 + $0x718] sm:$0xff]
    %v307 = vld [vmem:[#allocation5 + $0x720] sm:$0xff]
    %v308 = vld [vmem:[#allocation5 + $0x728] sm:$0xff]
    %v309 = vld [vmem:[#allocation5 + $0x730] sm:$0xff]
    %v310 = vld [vmem:[#allocation5 + $0x738] sm:$0xff]
    %v311 = vld [vmem:[#allocation5 + $0x740] sm:$0xff]
    %v312 = vld [vmem:[#allocation5 + $0x748] sm:$0xff]
    %v313 = vld [vmem:[#allocation5 + $0x750] sm:$0xff]
    %v314 = vld [vmem:[#allocation5 + $0x758] sm:$0xff]
    %v315 = vld [vmem:[#allocation5 + $0x760] sm:$0xff]
    %v316 = vld [vmem:[#allocation5 + $0x768] sm:$0xff]
    %v317 = vld [vmem:[#allocation5 + $0x770] sm:$0xff]
    %v318 = vld [vmem:[#allocation5 + $0x778] sm:$0xff]
    %v319 = vld [vmem:[#allocation5 + $0x780] sm:$0xff]
    %v320 = vld [vmem:[#allocation5 + $0x788] sm:$0xff]
    %v321 = vld [vmem:[#allocation5 + $0x790] sm:$0xff]
    %v322 = vld [vmem:[#allocation5 + $0x798] sm:$0xff]
    %v323 = vld [vmem:[#allocation5 + $0x7a0] sm:$0xff]
    %v324 = vld [vmem:[#allocation5 + $0x7a8] sm:$0xff]
    %v325 = vld [vmem:[#allocation5 + $0x7b0] sm:$0xff]
    %v326 = vld [vmem:[#allocation5 + $0x7b8] sm:$0xff]
    %v327 = vld [vmem:[#allocation5 + $0x7c0] sm:$0xff]
    %v328 = vld [vmem:[#allocation5 + $0x7c8] sm:$0xff]
    %v329 = vld [vmem:[#allocation5 + $0x7d0] sm:$0xff]
    %v330 = vld [vmem:[#allocation5 + $0x7d8] sm:$0xff]
    %v331 = vld [vmem:[#allocation5 + $0x7e0] sm:$0xff]
    %v332 = vld [vmem:[#allocation5 + $0x7e8] sm:$0xff]
    %v333 = vld [vmem:[#allocation5 + $0x7f0] sm:$0xff]
    %v334 = vld [vmem:[#allocation5 + $0x7f8] sm:$0xff]
    %v335 = vld [vmem:[#allocation7] sm:$0xff]
    %v337 = vlaneseq
    %v338 = vshrl.u32 %v337, 7
    %v339 = vsub.s32 0, %v338
    %v340 = vrot.slane %v335, %v339
    %v341 = vlaneseq
    %v342 = vshrl.u32 %v341, 7
    %v343 = vsub.s32 1, %v342
    %v344 = vrot.slane %v335, %v343
    %v345 = vlaneseq
    %v346 = vshrl.u32 %v345, 7
    %v347 = vsub.s32 2, %v346
    %v348 = vrot.slane %v335, %v347
    %v349 = vlaneseq
    %v350 = vshrl.u32 %v349, 7
    %v351 = vsub.s32 3, %v350
    %v352 = vrot.slane %v335, %v351
    %v353 = vlaneseq
    %v354 = vshrl.u32 %v353, 7
    %v355 = vsub.s32 4, %v354
    %v356 = vrot.slane %v335, %v355
    %v357 = vlaneseq
    %v358 = vshrl.u32 %v357, 7
    %v359 = vsub.s32 5, %v358
    %v360 = vrot.slane %v335, %v359
    %v361 = vlaneseq
    %v362 = vshrl.u32 %v361, 7
    %v363 = vsub.s32 6, %v362
    %v364 = vrot.slane %v335, %v363
    %v365 = vlaneseq
    %v366 = vshrl.u32 %v365, 7
    %v367 = vsub.s32 7, %v366
    %v368 = vrot.slane %v335, %v367
    %v633 = vunpack.c.l.b16 %v79
    %v634 = vunpack.c.h.b16 %v79
    %v635 = vunpack.c.l.b16 %v80
    %v636 = vunpack.c.h.b16 %v80
    %v637 = vunpack.c.l.b16 %v81
    %v638 = vunpack.c.h.b16 %v81
    %v639 = vunpack.c.l.b16 %v82
    %v640 = vunpack.c.h.b16 %v82
    %v641 = vunpack.c.l.b16 %v83
    %v642 = vunpack.c.h.b16 %v83
    %v643 = vunpack.c.l.b16 %v84
    %v644 = vunpack.c.h.b16 %v84
    %v645 = vunpack.c.l.b16 %v85
    %v646 = vunpack.c.h.b16 %v85
    %v647 = vunpack.c.l.b16 %v86
    %v648 = vunpack.c.h.b16 %v86
    %v649 = vunpack.c.l.b16 %v87
    %v650 = vunpack.c.h.b16 %v87
    %v651 = vunpack.c.l.b16 %v88
    %v652 = vunpack.c.h.b16 %v88
    %v653 = vunpack.c.l.b16 %v89
    %v654 = vunpack.c.h.b16 %v89
    %v655 = vunpack.c.l.b16 %v90
    %v656 = vunpack.c.h.b16 %v90
    %v657 = vunpack.c.l.b16 %v91
    %v658 = vunpack.c.h.b16 %v91
    %v659 = vunpack.c.l.b16 %v92
    %v660 = vunpack.c.h.b16 %v92
    %v661 = vunpack.c.l.b16 %v93
    %v662 = vunpack.c.h.b16 %v93
    %v663 = vunpack.c.l.b16 %v94
    %v664 = vunpack.c.h.b16 %v94
    %v665 = vunpack.c.l.b16 %v95
    %v666 = vunpack.c.h.b16 %v95
    %v667 = vunpack.c.l.b16 %v96
    %v668 = vunpack.c.h.b16 %v96
    %v669 = vunpack.c.l.b16 %v97
    %v670 = vunpack.c.h.b16 %v97
    %v671 = vunpack.c.l.b16 %v98
    %v672 = vunpack.c.h.b16 %v98
    %v673 = vunpack.c.l.b16 %v99
    %v674 = vunpack.c.h.b16 %v99
    %v675 = vunpack.c.l.b16 %v100
    %v676 = vunpack.c.h.b16 %v100
    %v677 = vunpack.c.l.b16 %v101
    %v678 = vunpack.c.h.b16 %v101
    %v679 = vunpack.c.l.b16 %v102
    %v680 = vunpack.c.h.b16 %v102
    %v681 = vunpack.c.l.b16 %v103
    %v682 = vunpack.c.h.b16 %v103
    %v683 = vunpack.c.l.b16 %v104
    %v684 = vunpack.c.h.b16 %v104
    %v685 = vunpack.c.l.b16 %v105
    %v686 = vunpack.c.h.b16 %v105
    %v687 = vunpack.c.l.b16 %v106
    %v688 = vunpack.c.h.b16 %v106
    %v689 = vunpack.c.l.b16 %v107
    %v690 = vunpack.c.h.b16 %v107
    %v691 = vunpack.c.l.b16 %v108
    %v692 = vunpack.c.h.b16 %v108
    %v693 = vunpack.c.l.b16 %v109
    %v694 = vunpack.c.h.b16 %v109
    %v695 = vunpack.c.l.b16 %v110
    %v696 = vunpack.c.h.b16 %v110
    %v697 = vunpack.c.l.b16 %v111
    %v698 = vunpack.c.h.b16 %v111
    %v699 = vunpack.c.l.b16 %v112
    %v700 = vunpack.c.h.b16 %v112
    %v701 = vunpack.c.l.b16 %v113
    %v702 = vunpack.c.h.b16 %v113
    %v703 = vunpack.c.l.b16 %v114
    %v704 = vunpack.c.h.b16 %v114
    %v705 = vunpack.c.l.b16 %v115
    %v706 = vunpack.c.h.b16 %v115
    %v707 = vunpack.c.l.b16 %v116
    %v708 = vunpack.c.h.b16 %v116
    %v709 = vunpack.c.l.b16 %v117
    %v710 = vunpack.c.h.b16 %v117
    %v711 = vunpack.c.l.b16 %v118
    %v712 = vunpack.c.h.b16 %v118
    %v713 = vunpack.c.l.b16 %v119
    %v714 = vunpack.c.h.b16 %v119
    %v715 = vunpack.c.l.b16 %v120
    %v716 = vunpack.c.h.b16 %v120
    %v717 = vunpack.c.l.b16 %v121
    %v718 = vunpack.c.h.b16 %v121
    %v719 = vunpack.c.l.b16 %v122
    %v720 = vunpack.c.h.b16 %v122
    %v721 = vunpack.c.l.b16 %v123
    %v722 = vunpack.c.h.b16 %v123
    %v723 = vunpack.c.l.b16 %v124
    %v724 = vunpack.c.h.b16 %v124
    %v725 = vunpack.c.l.b16 %v125
    %v726 = vunpack.c.h.b16 %v125
    %v727 = vunpack.c.l.b16 %v126
    %v728 = vunpack.c.h.b16 %v126
    %v729 = vunpack.c.l.b16 %v127
    %v730 = vunpack.c.h.b16 %v127
    %v731 = vunpack.c.l.b16 %v128
    %v732 = vunpack.c.h.b16 %v128
    %v733 = vunpack.c.l.b16 %v129
    %v734 = vunpack.c.h.b16 %v129
    %v735 = vunpack.c.l.b16 %v130
    %v736 = vunpack.c.h.b16 %v130
    %v737 = vunpack.c.l.b16 %v131
    %v738 = vunpack.c.h.b16 %v131
    %v739 = vunpack.c.l.b16 %v132
    %v740 = vunpack.c.h.b16 %v132
    %v741 = vunpack.c.l.b16 %v133
    %v742 = vunpack.c.h.b16 %v133
    %v743 = vunpack.c.l.b16 %v134
    %v744 = vunpack.c.h.b16 %v134
    %v745 = vunpack.c.l.b16 %v135
    %v746 = vunpack.c.h.b16 %v135
    %v747 = vunpack.c.l.b16 %v136
    %v748 = vunpack.c.h.b16 %v136
    %v749 = vunpack.c.l.b16 %v137
    %v750 = vunpack.c.h.b16 %v137
    %v751 = vunpack.c.l.b16 %v138
    %v752 = vunpack.c.h.b16 %v138
    %v753 = vunpack.c.l.b16 %v139
    %v754 = vunpack.c.h.b16 %v139
    %v755 = vunpack.c.l.b16 %v140
    %v756 = vunpack.c.h.b16 %v140
    %v757 = vunpack.c.l.b16 %v141
    %v758 = vunpack.c.h.b16 %v141
    %v759 = vunpack.c.l.b16 %v142
    %v760 = vunpack.c.h.b16 %v142
    %v761 = vunpack.c.l.b16 %v143
    %v762 = vunpack.c.h.b16 %v143
    %v763 = vunpack.c.l.b16 %v144
    %v764 = vunpack.c.h.b16 %v144
    %v765 = vunpack.c.l.b16 %v145
    %v766 = vunpack.c.h.b16 %v145
    %v767 = vunpack.c.l.b16 %v146
    %v768 = vunpack.c.h.b16 %v146
    %v769 = vunpack.c.l.b16 %v147
    %v770 = vunpack.c.h.b16 %v147
    %v771 = vunpack.c.l.b16 %v148
    %v772 = vunpack.c.h.b16 %v148
    %v773 = vunpack.c.l.b16 %v149
    %v774 = vunpack.c.h.b16 %v149
    %v775 = vunpack.c.l.b16 %v150
    %v776 = vunpack.c.h.b16 %v150
    %v777 = vunpack.c.l.b16 %v151
    %v778 = vunpack.c.h.b16 %v151
    %v779 = vunpack.c.l.b16 %v152
    %v780 = vunpack.c.h.b16 %v152
    %v781 = vunpack.c.l.b16 %v153
    %v782 = vunpack.c.h.b16 %v153
    %v783 = vunpack.c.l.b16 %v154
    %v784 = vunpack.c.h.b16 %v154
    %v785 = vunpack.c.l.b16 %v155
    %v786 = vunpack.c.h.b16 %v155
    %v787 = vunpack.c.l.b16 %v156
    %v788 = vunpack.c.h.b16 %v156
    %v789 = vunpack.c.l.b16 %v157
    %v790 = vunpack.c.h.b16 %v157
    %v791 = vunpack.c.l.b16 %v158
    %v792 = vunpack.c.h.b16 %v158
    %v793 = vunpack.c.l.b16 %v159
    %v794 = vunpack.c.h.b16 %v159
    %v795 = vunpack.c.l.b16 %v160
    %v796 = vunpack.c.h.b16 %v160
    %v797 = vunpack.c.l.b16 %v161
    %v798 = vunpack.c.h.b16 %v161
    %v799 = vunpack.c.l.b16 %v162
    %v800 = vunpack.c.h.b16 %v162
    %v801 = vunpack.c.l.b16 %v163
    %v802 = vunpack.c.h.b16 %v163
    %v803 = vunpack.c.l.b16 %v164
    %v804 = vunpack.c.h.b16 %v164
    %v805 = vunpack.c.l.b16 %v165
    %v806 = vunpack.c.h.b16 %v165
    %v807 = vunpack.c.l.b16 %v166
    %v808 = vunpack.c.h.b16 %v166
    %v809 = vunpack.c.l.b16 %v167
    %v810 = vunpack.c.h.b16 %v167
    %v811 = vunpack.c.l.b16 %v168
    %v812 = vunpack.c.h.b16 %v168
    %v813 = vunpack.c.l.b16 %v169
    %v814 = vunpack.c.h.b16 %v169
    %v815 = vunpack.c.l.b16 %v170
    %v816 = vunpack.c.h.b16 %v170
    %v817 = vunpack.c.l.b16 %v171
    %v818 = vunpack.c.h.b16 %v171
    %v819 = vunpack.c.l.b16 %v172
    %v820 = vunpack.c.h.b16 %v172
    %v821 = vunpack.c.l.b16 %v173
    %v822 = vunpack.c.h.b16 %v173
    %v823 = vunpack.c.l.b16 %v174
    %v824 = vunpack.c.h.b16 %v174
    %v825 = vunpack.c.l.b16 %v175
    %v826 = vunpack.c.h.b16 %v175
    %v827 = vunpack.c.l.b16 %v176
    %v828 = vunpack.c.h.b16 %v176
    %v829 = vunpack.c.l.b16 %v177
    %v830 = vunpack.c.h.b16 %v177
    %v831 = vunpack.c.l.b16 %v178
    %v832 = vunpack.c.h.b16 %v178
    %v833 = vunpack.c.l.b16 %v179
    %v834 = vunpack.c.h.b16 %v179
    %v835 = vunpack.c.l.b16 %v180
    %v836 = vunpack.c.h.b16 %v180
    %v837 = vunpack.c.l.b16 %v181
    %v838 = vunpack.c.h.b16 %v181
    %v839 = vunpack.c.l.b16 %v182
    %v840 = vunpack.c.h.b16 %v182
    %v841 = vunpack.c.l.b16 %v183
    %v842 = vunpack.c.h.b16 %v183
    %v843 = vunpack.c.l.b16 %v184
    %v844 = vunpack.c.h.b16 %v184
    %v845 = vunpack.c.l.b16 %v185
    %v846 = vunpack.c.h.b16 %v185
    %v847 = vunpack.c.l.b16 %v186
    %v848 = vunpack.c.h.b16 %v186
    %v849 = vunpack.c.l.b16 %v187
    %v850 = vunpack.c.h.b16 %v187
    %v851 = vunpack.c.l.b16 %v188
    %v852 = vunpack.c.h.b16 %v188
    %v853 = vunpack.c.l.b16 %v189
    %v854 = vunpack.c.h.b16 %v189
    %v855 = vunpack.c.l.b16 %v190
    %v856 = vunpack.c.h.b16 %v190
    %v857 = vunpack.c.l.b16 %v191
    %v858 = vunpack.c.h.b16 %v191
    %v859 = vunpack.c.l.b16 %v192
    %v860 = vunpack.c.h.b16 %v192
    %v861 = vunpack.c.l.b16 %v193
    %v862 = vunpack.c.h.b16 %v193
    %v863 = vunpack.c.l.b16 %v194
    %v864 = vunpack.c.h.b16 %v194
    %v865 = vunpack.c.l.b16 %v195
    %v866 = vunpack.c.h.b16 %v195
    %v867 = vunpack.c.l.b16 %v196
    %v868 = vunpack.c.h.b16 %v196
    %v869 = vunpack.c.l.b16 %v197
    %v870 = vunpack.c.h.b16 %v197
    %v871 = vunpack.c.l.b16 %v198
    %v872 = vunpack.c.h.b16 %v198
    %v873 = vunpack.c.l.b16 %v199
    %v874 = vunpack.c.h.b16 %v199
    %v875 = vunpack.c.l.b16 %v200
    %v876 = vunpack.c.h.b16 %v200
    %v877 = vunpack.c.l.b16 %v201
    %v878 = vunpack.c.h.b16 %v201
    %v879 = vunpack.c.l.b16 %v202
    %v880 = vunpack.c.h.b16 %v202
    %v881 = vunpack.c.l.b16 %v203
    %v882 = vunpack.c.h.b16 %v203
    %v883 = vunpack.c.l.b16 %v204
    %v884 = vunpack.c.h.b16 %v204
    %v885 = vunpack.c.l.b16 %v205
    %v886 = vunpack.c.h.b16 %v205
    %v887 = vunpack.c.l.b16 %v206
    %v888 = vunpack.c.h.b16 %v206
    %v889 = vunpack.c.l.b16 %v207
    %v890 = vunpack.c.h.b16 %v207
    %v891 = vunpack.c.l.b16 %v208
    %v892 = vunpack.c.h.b16 %v208
    %v893 = vunpack.c.l.b16 %v209
    %v894 = vunpack.c.h.b16 %v209
    %v895 = vunpack.c.l.b16 %v210
    %v896 = vunpack.c.h.b16 %v210
    %v897 = vunpack.c.l.b16 %v211
    %v898 = vunpack.c.h.b16 %v211
    %v899 = vunpack.c.l.b16 %v212
    %v900 = vunpack.c.h.b16 %v212
    %v901 = vunpack.c.l.b16 %v213
    %v902 = vunpack.c.h.b16 %v213
    %v903 = vunpack.c.l.b16 %v214
    %v904 = vunpack.c.h.b16 %v214
    %v905 = vunpack.c.l.b16 %v215
    %v906 = vunpack.c.h.b16 %v215
    %v907 = vunpack.c.l.b16 %v216
    %v908 = vunpack.c.h.b16 %v216
    %v909 = vunpack.c.l.b16 %v217
    %v910 = vunpack.c.h.b16 %v217
    %v911 = vunpack.c.l.b16 %v218
    %v912 = vunpack.c.h.b16 %v218
    %v913 = vunpack.c.l.b16 %v219
    %v914 = vunpack.c.h.b16 %v219
    %v915 = vunpack.c.l.b16 %v220
    %v916 = vunpack.c.h.b16 %v220
    %v917 = vunpack.c.l.b16 %v221
    %v918 = vunpack.c.h.b16 %v221
    %v919 = vunpack.c.l.b16 %v222
    %v920 = vunpack.c.h.b16 %v222
    %v921 = vunpack.c.l.b16 %v223
    %v922 = vunpack.c.h.b16 %v223
    %v923 = vunpack.c.l.b16 %v224
    %v924 = vunpack.c.h.b16 %v224
    %v925 = vunpack.c.l.b16 %v225
    %v926 = vunpack.c.h.b16 %v225
    %v927 = vunpack.c.l.b16 %v226
    %v928 = vunpack.c.h.b16 %v226
    %v929 = vunpack.c.l.b16 %v227
    %v930 = vunpack.c.h.b16 %v227
    %v931 = vunpack.c.l.b16 %v228
    %v932 = vunpack.c.h.b16 %v228
    %v933 = vunpack.c.l.b16 %v229
    %v934 = vunpack.c.h.b16 %v229
    %v935 = vunpack.c.l.b16 %v230
    %v936 = vunpack.c.h.b16 %v230
    %v937 = vunpack.c.l.b16 %v231
    %v938 = vunpack.c.h.b16 %v231
    %v939 = vunpack.c.l.b16 %v232
    %v940 = vunpack.c.h.b16 %v232
    %v941 = vunpack.c.l.b16 %v233
    %v942 = vunpack.c.h.b16 %v233
    %v943 = vunpack.c.l.b16 %v234
    %v944 = vunpack.c.h.b16 %v234
    %v945 = vunpack.c.l.b16 %v235
    %v946 = vunpack.c.h.b16 %v235
    %v947 = vunpack.c.l.b16 %v236
    %v948 = vunpack.c.h.b16 %v236
    %v949 = vunpack.c.l.b16 %v237
    %v950 = vunpack.c.h.b16 %v237
    %v951 = vunpack.c.l.b16 %v238
    %v952 = vunpack.c.h.b16 %v238
    %v953 = vunpack.c.l.b16 %v239
    %v954 = vunpack.c.h.b16 %v239
    %v955 = vunpack.c.l.b16 %v240
    %v956 = vunpack.c.h.b16 %v240
    %v957 = vunpack.c.l.b16 %v241
    %v958 = vunpack.c.h.b16 %v241
    %v959 = vunpack.c.l.b16 %v242
    %v960 = vunpack.c.h.b16 %v242
    %v961 = vunpack.c.l.b16 %v243
    %v962 = vunpack.c.h.b16 %v243
    %v963 = vunpack.c.l.b16 %v244
    %v964 = vunpack.c.h.b16 %v244
    %v965 = vunpack.c.l.b16 %v245
    %v966 = vunpack.c.h.b16 %v245
    %v967 = vunpack.c.l.b16 %v246
    %v968 = vunpack.c.h.b16 %v246
    %v969 = vunpack.c.l.b16 %v247
    %v970 = vunpack.c.h.b16 %v247
    %v971 = vunpack.c.l.b16 %v248
    %v972 = vunpack.c.h.b16 %v248
    %v973 = vunpack.c.l.b16 %v249
    %v974 = vunpack.c.h.b16 %v249
    %v975 = vunpack.c.l.b16 %v250
    %v976 = vunpack.c.h.b16 %v250
    %v977 = vunpack.c.l.b16 %v251
    %v978 = vunpack.c.h.b16 %v251
    %v979 = vunpack.c.l.b16 %v252
    %v980 = vunpack.c.h.b16 %v252
    %v981 = vunpack.c.l.b16 %v253
    %v982 = vunpack.c.h.b16 %v253
    %v983 = vunpack.c.l.b16 %v254
    %v984 = vunpack.c.h.b16 %v254
    %v985 = vunpack.c.l.b16 %v255
    %v986 = vunpack.c.h.b16 %v255
    %v987 = vunpack.c.l.b16 %v256
    %v988 = vunpack.c.h.b16 %v256
    %v989 = vunpack.c.l.b16 %v257
    %v990 = vunpack.c.h.b16 %v257
    %v991 = vunpack.c.l.b16 %v258
    %v992 = vunpack.c.h.b16 %v258
    %v993 = vunpack.c.l.b16 %v259
    %v994 = vunpack.c.h.b16 %v259
    %v995 = vunpack.c.l.b16 %v260
    %v996 = vunpack.c.h.b16 %v260
    %v997 = vunpack.c.l.b16 %v261
    %v998 = vunpack.c.h.b16 %v261
    %v999 = vunpack.c.l.b16 %v262
    %v1000 = vunpack.c.h.b16 %v262
    %v1001 = vunpack.c.l.b16 %v263
    %v1002 = vunpack.c.h.b16 %v263
    %v1003 = vunpack.c.l.b16 %v264
    %v1004 = vunpack.c.h.b16 %v264
    %v1005 = vunpack.c.l.b16 %v265
    %v1006 = vunpack.c.h.b16 %v265
    %v1007 = vunpack.c.l.b16 %v266
    %v1008 = vunpack.c.h.b16 %v266
    %v1009 = vunpack.c.l.b16 %v267
    %v1010 = vunpack.c.h.b16 %v267
    %v1011 = vunpack.c.l.b16 %v268
    %v1012 = vunpack.c.h.b16 %v268
    %v1013 = vunpack.c.l.b16 %v269
    %v1014 = vunpack.c.h.b16 %v269
    %v1015 = vunpack.c.l.b16 %v270
    %v1016 = vunpack.c.h.b16 %v270
    %v1017 = vunpack.c.l.b16 %v271
    %v1018 = vunpack.c.h.b16 %v271
    %v1019 = vunpack.c.l.b16 %v272
    %v1020 = vunpack.c.h.b16 %v272
    %v1021 = vunpack.c.l.b16 %v273
    %v1022 = vunpack.c.h.b16 %v273
    %v1023 = vunpack.c.l.b16 %v274
    %v1024 = vunpack.c.h.b16 %v274
    %v1025 = vunpack.c.l.b16 %v275
    %v1026 = vunpack.c.h.b16 %v275
    %v1027 = vunpack.c.l.b16 %v276
    %v1028 = vunpack.c.h.b16 %v276
    %v1029 = vunpack.c.l.b16 %v277
    %v1030 = vunpack.c.h.b16 %v277
    %v1031 = vunpack.c.l.b16 %v278
    %v1032 = vunpack.c.h.b16 %v278
    %v1033 = vunpack.c.l.b16 %v279
    %v1034 = vunpack.c.h.b16 %v279
    %v1035 = vunpack.c.l.b16 %v280
    %v1036 = vunpack.c.h.b16 %v280
    %v1037 = vunpack.c.l.b16 %v281
    %v1038 = vunpack.c.h.b16 %v281
    %v1039 = vunpack.c.l.b16 %v282
    %v1040 = vunpack.c.h.b16 %v282
    %v1041 = vunpack.c.l.b16 %v283
    %v1042 = vunpack.c.h.b16 %v283
    %v1043 = vunpack.c.l.b16 %v284
    %v1044 = vunpack.c.h.b16 %v284
    %v1045 = vunpack.c.l.b16 %v285
    %v1046 = vunpack.c.h.b16 %v285
    %v1047 = vunpack.c.l.b16 %v286
    %v1048 = vunpack.c.h.b16 %v286
    %v1049 = vunpack.c.l.b16 %v287
    %v1050 = vunpack.c.h.b16 %v287
    %v1051 = vunpack.c.l.b16 %v288
    %v1052 = vunpack.c.h.b16 %v288
    %v1053 = vunpack.c.l.b16 %v289
    %v1054 = vunpack.c.h.b16 %v289
    %v1055 = vunpack.c.l.b16 %v290
    %v1056 = vunpack.c.h.b16 %v290
    %v1057 = vunpack.c.l.b16 %v291
    %v1058 = vunpack.c.h.b16 %v291
    %v1059 = vunpack.c.l.b16 %v292
    %v1060 = vunpack.c.h.b16 %v292
    %v1061 = vunpack.c.l.b16 %v293
    %v1062 = vunpack.c.h.b16 %v293
    %v1063 = vunpack.c.l.b16 %v294
    %v1064 = vunpack.c.h.b16 %v294
    %v1065 = vunpack.c.l.b16 %v295
    %v1066 = vunpack.c.h.b16 %v295
    %v1067 = vunpack.c.l.b16 %v296
    %v1068 = vunpack.c.h.b16 %v296
    %v1069 = vunpack.c.l.b16 %v297
    %v1070 = vunpack.c.h.b16 %v297
    %v1071 = vunpack.c.l.b16 %v298
    %v1072 = vunpack.c.h.b16 %v298
    %v1073 = vunpack.c.l.b16 %v299
    %v1074 = vunpack.c.h.b16 %v299
    %v1075 = vunpack.c.l.b16 %v300
    %v1076 = vunpack.c.h.b16 %v300
    %v1077 = vunpack.c.l.b16 %v301
    %v1078 = vunpack.c.h.b16 %v301
    %v1079 = vunpack.c.l.b16 %v302
    %v1080 = vunpack.c.h.b16 %v302
    %v1081 = vunpack.c.l.b16 %v303
    %v1082 = vunpack.c.h.b16 %v303
    %v1083 = vunpack.c.l.b16 %v304
    %v1084 = vunpack.c.h.b16 %v304
    %v1085 = vunpack.c.l.b16 %v305
    %v1086 = vunpack.c.h.b16 %v305
    %v1087 = vunpack.c.l.b16 %v306
    %v1088 = vunpack.c.h.b16 %v306
    %v1089 = vunpack.c.l.b16 %v307
    %v1090 = vunpack.c.h.b16 %v307
    %v1091 = vunpack.c.l.b16 %v308
    %v1092 = vunpack.c.h.b16 %v308
    %v1093 = vunpack.c.l.b16 %v309
    %v1094 = vunpack.c.h.b16 %v309
    %v1095 = vunpack.c.l.b16 %v310
    %v1096 = vunpack.c.h.b16 %v310
    %v1097 = vunpack.c.l.b16 %v311
    %v1098 = vunpack.c.h.b16 %v311
    %v1099 = vunpack.c.l.b16 %v312
    %v1100 = vunpack.c.h.b16 %v312
    %v1101 = vunpack.c.l.b16 %v313
    %v1102 = vunpack.c.h.b16 %v313
    %v1103 = vunpack.c.l.b16 %v314
    %v1104 = vunpack.c.h.b16 %v314
    %v1105 = vunpack.c.l.b16 %v315
    %v1106 = vunpack.c.h.b16 %v315
    %v1107 = vunpack.c.l.b16 %v316
    %v1108 = vunpack.c.h.b16 %v316
    %v1109 = vunpack.c.l.b16 %v317
    %v1110 = vunpack.c.h.b16 %v317
    %v1111 = vunpack.c.l.b16 %v318
    %v1112 = vunpack.c.h.b16 %v318
    %v1113 = vunpack.c.l.b16 %v319
    %v1114 = vunpack.c.h.b16 %v319
    %v1115 = vunpack.c.l.b16 %v320
    %v1116 = vunpack.c.h.b16 %v320
    %v1117 = vunpack.c.l.b16 %v321
    %v1118 = vunpack.c.h.b16 %v321
    %v1119 = vunpack.c.l.b16 %v322
    %v1120 = vunpack.c.h.b16 %v322
    %v1121 = vunpack.c.l.b16 %v323
    %v1122 = vunpack.c.h.b16 %v323
    %v1123 = vunpack.c.l.b16 %v324
    %v1124 = vunpack.c.h.b16 %v324
    %v1125 = vunpack.c.l.b16 %v325
    %v1126 = vunpack.c.h.b16 %v325
    %v1127 = vunpack.c.l.b16 %v326
    %v1128 = vunpack.c.h.b16 %v326
    %v1129 = vunpack.c.l.b16 %v327
    %v1130 = vunpack.c.h.b16 %v327
    %v1131 = vunpack.c.l.b16 %v328
    %v1132 = vunpack.c.h.b16 %v328
    %v1133 = vunpack.c.l.b16 %v329
    %v1134 = vunpack.c.h.b16 %v329
    %v1135 = vunpack.c.l.b16 %v330
    %v1136 = vunpack.c.h.b16 %v330
    %v1137 = vunpack.c.l.b16 %v331
    %v1138 = vunpack.c.h.b16 %v331
    %v1139 = vunpack.c.l.b16 %v332
    %v1140 = vunpack.c.h.b16 %v332
    %v1141 = vunpack.c.l.b16 %v333
    %v1142 = vunpack.c.h.b16 %v333
    %v1143 = vunpack.c.l.b16 %v334
    %v1144 = vunpack.c.h.b16 %v334
    %v1145 = vpack.c.b16 %v641, %v633
    %v1146 = vpack.c.b16 %v642, %v634
    %v1147 = vpack.c.b16 %v643, %v635
    %v1148 = vpack.c.b16 %v644, %v636
    %v1149 = vpack.c.b16 %v645, %v637
    %v1150 = vpack.c.b16 %v646, %v638
    %v1151 = vpack.c.b16 %v647, %v639
    %v1152 = vpack.c.b16 %v648, %v640
    %v1153 = vpack.c.b16 %v657, %v649
    %v1154 = vpack.c.b16 %v658, %v650
    %v1155 = vpack.c.b16 %v659, %v651
    %v1156 = vpack.c.b16 %v660, %v652
    %v1157 = vpack.c.b16 %v661, %v653
    %v1158 = vpack.c.b16 %v662, %v654
    %v1159 = vpack.c.b16 %v663, %v655
    %v1160 = vpack.c.b16 %v664, %v656
    %v1161 = vpack.c.b16 %v673, %v665
    %v1162 = vpack.c.b16 %v674, %v666
    %v1163 = vpack.c.b16 %v675, %v667
    %v1164 = vpack.c.b16 %v676, %v668
    %v1165 = vpack.c.b16 %v677, %v669
    %v1166 = vpack.c.b16 %v678, %v670
    %v1167 = vpack.c.b16 %v679, %v671
    %v1168 = vpack.c.b16 %v680, %v672
    %v1169 = vpack.c.b16 %v689, %v681
    %v1170 = vpack.c.b16 %v690, %v682
    %v1171 = vpack.c.b16 %v691, %v683
    %v1172 = vpack.c.b16 %v692, %v684
    %v1173 = vpack.c.b16 %v693, %v685
    %v1174 = vpack.c.b16 %v694, %v686
    %v1175 = vpack.c.b16 %v695, %v687
    %v1176 = vpack.c.b16 %v696, %v688
    %v1177 = vpack.c.b16 %v705, %v697
    %v1178 = vpack.c.b16 %v706, %v698
    %v1179 = vpack.c.b16 %v707, %v699
    %v1180 = vpack.c.b16 %v708, %v700
    %v1181 = vpack.c.b16 %v709, %v701
    %v1182 = vpack.c.b16 %v710, %v702
    %v1183 = vpack.c.b16 %v711, %v703
    %v1184 = vpack.c.b16 %v712, %v704
    %v1185 = vpack.c.b16 %v721, %v713
    %v1186 = vpack.c.b16 %v722, %v714
    %v1187 = vpack.c.b16 %v723, %v715
    %v1188 = vpack.c.b16 %v724, %v716
    %v1189 = vpack.c.b16 %v725, %v717
    %v1190 = vpack.c.b16 %v726, %v718
    %v1191 = vpack.c.b16 %v727, %v719
    %v1192 = vpack.c.b16 %v728, %v720
    %v1193 = vpack.c.b16 %v737, %v729
    %v1194 = vpack.c.b16 %v738, %v730
    %v1195 = vpack.c.b16 %v739, %v731
    %v1196 = vpack.c.b16 %v740, %v732
    %v1197 = vpack.c.b16 %v741, %v733
    %v1198 = vpack.c.b16 %v742, %v734
    %v1199 = vpack.c.b16 %v743, %v735
    %v1200 = vpack.c.b16 %v744, %v736
    %v1201 = vpack.c.b16 %v753, %v745
    %v1202 = vpack.c.b16 %v754, %v746
    %v1203 = vpack.c.b16 %v755, %v747
    %v1204 = vpack.c.b16 %v756, %v748
    %v1205 = vpack.c.b16 %v757, %v749
    %v1206 = vpack.c.b16 %v758, %v750
    %v1207 = vpack.c.b16 %v759, %v751
    %v1208 = vpack.c.b16 %v760, %v752
    %v1209 = vpack.c.b16 %v769, %v761
    %v1210 = vpack.c.b16 %v770, %v762
    %v1211 = vpack.c.b16 %v771, %v763
    %v1212 = vpack.c.b16 %v772, %v764
    %v1213 = vpack.c.b16 %v773, %v765
    %v1214 = vpack.c.b16 %v774, %v766
    %v1215 = vpack.c.b16 %v775, %v767
    %v1216 = vpack.c.b16 %v776, %v768
    %v1217 = vpack.c.b16 %v785, %v777
    %v1218 = vpack.c.b16 %v786, %v778
    %v1219 = vpack.c.b16 %v787, %v779
    %v1220 = vpack.c.b16 %v788, %v780
    %v1221 = vpack.c.b16 %v789, %v781
    %v1222 = vpack.c.b16 %v790, %v782
    %v1223 = vpack.c.b16 %v791, %v783
    %v1224 = vpack.c.b16 %v792, %v784
    %v1225 = vpack.c.b16 %v801, %v793
    %v1226 = vpack.c.b16 %v802, %v794
    %v1227 = vpack.c.b16 %v803, %v795
    %v1228 = vpack.c.b16 %v804, %v796
    %v1229 = vpack.c.b16 %v805, %v797
    %v1230 = vpack.c.b16 %v806, %v798
    %v1231 = vpack.c.b16 %v807, %v799
    %v1232 = vpack.c.b16 %v808, %v800
    %v1233 = vpack.c.b16 %v817, %v809
    %v1234 = vpack.c.b16 %v818, %v810
    %v1235 = vpack.c.b16 %v819, %v811
    %v1236 = vpack.c.b16 %v820, %v812
    %v1237 = vpack.c.b16 %v821, %v813
    %v1238 = vpack.c.b16 %v822, %v814
    %v1239 = vpack.c.b16 %v823, %v815
    %v1240 = vpack.c.b16 %v824, %v816
    %v1241 = vpack.c.b16 %v833, %v825
    %v1242 = vpack.c.b16 %v834, %v826
    %v1243 = vpack.c.b16 %v835, %v827
    %v1244 = vpack.c.b16 %v836, %v828
    %v1245 = vpack.c.b16 %v837, %v829
    %v1246 = vpack.c.b16 %v838, %v830
    %v1247 = vpack.c.b16 %v839, %v831
    %v1248 = vpack.c.b16 %v840, %v832
    %v1249 = vpack.c.b16 %v849, %v841
    %v1250 = vpack.c.b16 %v850, %v842
    %v1251 = vpack.c.b16 %v851, %v843
    %v1252 = vpack.c.b16 %v852, %v844
    %v1253 = vpack.c.b16 %v853, %v845
    %v1254 = vpack.c.b16 %v854, %v846
    %v1255 = vpack.c.b16 %v855, %v847
    %v1256 = vpack.c.b16 %v856, %v848
    %v1257 = vpack.c.b16 %v865, %v857
    %v1258 = vpack.c.b16 %v866, %v858
    %v1259 = vpack.c.b16 %v867, %v859
    %v1260 = vpack.c.b16 %v868, %v860
    %v1261 = vpack.c.b16 %v869, %v861
    %v1262 = vpack.c.b16 %v870, %v862
    %v1263 = vpack.c.b16 %v871, %v863
    %v1264 = vpack.c.b16 %v872, %v864
    %v1265 = vpack.c.b16 %v881, %v873
    %v1266 = vpack.c.b16 %v882, %v874
    %v1267 = vpack.c.b16 %v883, %v875
    %v1268 = vpack.c.b16 %v884, %v876
    %v1269 = vpack.c.b16 %v885, %v877
    %v1270 = vpack.c.b16 %v886, %v878
    %v1271 = vpack.c.b16 %v887, %v879
    %v1272 = vpack.c.b16 %v888, %v880
    %v1273 = vpack.c.b16 %v897, %v889
    %v1274 = vpack.c.b16 %v898, %v890
    %v1275 = vpack.c.b16 %v899, %v891
    %v1276 = vpack.c.b16 %v900, %v892
    %v1277 = vpack.c.b16 %v901, %v893
    %v1278 = vpack.c.b16 %v902, %v894
    %v1279 = vpack.c.b16 %v903, %v895
    %v1280 = vpack.c.b16 %v904, %v896
    %v1281 = vpack.c.b16 %v913, %v905
    %v1282 = vpack.c.b16 %v914, %v906
    %v1283 = vpack.c.b16 %v915, %v907
    %v1284 = vpack.c.b16 %v916, %v908
    %v1285 = vpack.c.b16 %v917, %v909
    %v1286 = vpack.c.b16 %v918, %v910
    %v1287 = vpack.c.b16 %v919, %v911
    %v1288 = vpack.c.b16 %v920, %v912
    %v1289 = vpack.c.b16 %v929, %v921
    %v1290 = vpack.c.b16 %v930, %v922
    %v1291 = vpack.c.b16 %v931, %v923
    %v1292 = vpack.c.b16 %v932, %v924
    %v1293 = vpack.c.b16 %v933, %v925
    %v1294 = vpack.c.b16 %v934, %v926
    %v1295 = vpack.c.b16 %v935, %v927
    %v1296 = vpack.c.b16 %v936, %v928
    %v1297 = vpack.c.b16 %v945, %v937
    %v1298 = vpack.c.b16 %v946, %v938
    %v1299 = vpack.c.b16 %v947, %v939
    %v1300 = vpack.c.b16 %v948, %v940
    %v1301 = vpack.c.b16 %v949, %v941
    %v1302 = vpack.c.b16 %v950, %v942
    %v1303 = vpack.c.b16 %v951, %v943
    %v1304 = vpack.c.b16 %v952, %v944
    %v1305 = vpack.c.b16 %v961, %v953
    %v1306 = vpack.c.b16 %v962, %v954
    %v1307 = vpack.c.b16 %v963, %v955
    %v1308 = vpack.c.b16 %v964, %v956
    %v1309 = vpack.c.b16 %v965, %v957
    %v1310 = vpack.c.b16 %v966, %v958
    %v1311 = vpack.c.b16 %v967, %v959
    %v1312 = vpack.c.b16 %v968, %v960
    %v1313 = vpack.c.b16 %v977, %v969
    %v1314 = vpack.c.b16 %v978, %v970
    %v1315 = vpack.c.b16 %v979, %v971
    %v1316 = vpack.c.b16 %v980, %v972
    %v1317 = vpack.c.b16 %v981, %v973
    %v1318 = vpack.c.b16 %v982, %v974
    %v1319 = vpack.c.b16 %v983, %v975
    %v1320 = vpack.c.b16 %v984, %v976
    %v1321 = vpack.c.b16 %v993, %v985
    %v1322 = vpack.c.b16 %v994, %v986
    %v1323 = vpack.c.b16 %v995, %v987
    %v1324 = vpack.c.b16 %v996, %v988
    %v1325 = vpack.c.b16 %v997, %v989
    %v1326 = vpack.c.b16 %v998, %v990
    %v1327 = vpack.c.b16 %v999, %v991
    %v1328 = vpack.c.b16 %v1000, %v992
    %v1329 = vpack.c.b16 %v1009, %v1001
    %v1330 = vpack.c.b16 %v1010, %v1002
    %v1331 = vpack.c.b16 %v1011, %v1003
    %v1332 = vpack.c.b16 %v1012, %v1004
    %v1333 = vpack.c.b16 %v1013, %v1005
    %v1334 = vpack.c.b16 %v1014, %v1006
    %v1335 = vpack.c.b16 %v1015, %v1007
    %v1336 = vpack.c.b16 %v1016, %v1008
    %v1337 = vpack.c.b16 %v1025, %v1017
    %v1338 = vpack.c.b16 %v1026, %v1018
    %v1339 = vpack.c.b16 %v1027, %v1019
    %v1340 = vpack.c.b16 %v1028, %v1020
    %v1341 = vpack.c.b16 %v1029, %v1021
    %v1342 = vpack.c.b16 %v1030, %v1022
    %v1343 = vpack.c.b16 %v1031, %v1023
    %v1344 = vpack.c.b16 %v1032, %v1024
    %v1345 = vpack.c.b16 %v1041, %v1033
    %v1346 = vpack.c.b16 %v1042, %v1034
    %v1347 = vpack.c.b16 %v1043, %v1035
    %v1348 = vpack.c.b16 %v1044, %v1036
    %v1349 = vpack.c.b16 %v1045, %v1037
    %v1350 = vpack.c.b16 %v1046, %v1038
    %v1351 = vpack.c.b16 %v1047, %v1039
    %v1352 = vpack.c.b16 %v1048, %v1040
    %v1353 = vpack.c.b16 %v1057, %v1049
    %v1354 = vpack.c.b16 %v1058, %v1050
    %v1355 = vpack.c.b16 %v1059, %v1051
    %v1356 = vpack.c.b16 %v1060, %v1052
    %v1357 = vpack.c.b16 %v1061, %v1053
    %v1358 = vpack.c.b16 %v1062, %v1054
    %v1359 = vpack.c.b16 %v1063, %v1055
    %v1360 = vpack.c.b16 %v1064, %v1056
    %v1361 = vpack.c.b16 %v1073, %v1065
    %v1362 = vpack.c.b16 %v1074, %v1066
    %v1363 = vpack.c.b16 %v1075, %v1067
    %v1364 = vpack.c.b16 %v1076, %v1068
    %v1365 = vpack.c.b16 %v1077, %v1069
    %v1366 = vpack.c.b16 %v1078, %v1070
    %v1367 = vpack.c.b16 %v1079, %v1071
    %v1368 = vpack.c.b16 %v1080, %v1072
    %v1369 = vpack.c.b16 %v1089, %v1081
    %v1370 = vpack.c.b16 %v1090, %v1082
    %v1371 = vpack.c.b16 %v1091, %v1083
    %v1372 = vpack.c.b16 %v1092, %v1084
    %v1373 = vpack.c.b16 %v1093, %v1085
    %v1374 = vpack.c.b16 %v1094, %v1086
    %v1375 = vpack.c.b16 %v1095, %v1087
    %v1376 = vpack.c.b16 %v1096, %v1088
    %v1377 = vpack.c.b16 %v1105, %v1097
    %v1378 = vpack.c.b16 %v1106, %v1098
    %v1379 = vpack.c.b16 %v1107, %v1099
    %v1380 = vpack.c.b16 %v1108, %v1100
    %v1381 = vpack.c.b16 %v1109, %v1101
    %v1382 = vpack.c.b16 %v1110, %v1102
    %v1383 = vpack.c.b16 %v1111, %v1103
    %v1384 = vpack.c.b16 %v1112, %v1104
    %v1385 = vpack.c.b16 %v1121, %v1113
    %v1386 = vpack.c.b16 %v1122, %v1114
    %v1387 = vpack.c.b16 %v1123, %v1115
    %v1388 = vpack.c.b16 %v1124, %v1116
    %v1389 = vpack.c.b16 %v1125, %v1117
    %v1390 = vpack.c.b16 %v1126, %v1118
    %v1391 = vpack.c.b16 %v1127, %v1119
    %v1392 = vpack.c.b16 %v1128, %v1120
    %v1393 = vpack.c.b16 %v1137, %v1129
    %v1394 = vpack.c.b16 %v1138, %v1130
    %v1395 = vpack.c.b16 %v1139, %v1131
    %v1396 = vpack.c.b16 %v1140, %v1132
    %v1397 = vpack.c.b16 %v1141, %v1133
    %v1398 = vpack.c.b16 %v1142, %v1134
    %v1399 = vpack.c.b16 %v1143, %v1135
    %v1400 = vpack.c.b16 %v1144, %v1136
    %1657 = vmatprep.subr.bf16.mxu0 %v1202
    %1658 = vmatpush1.bf16.msra.mxu0 %v1201
    %1659 = vmatprep.subr.bf16.mxu0 %v1194
    %1660 = vmatpush1.bf16.msra.mxu0 %v1193
    %1661 = vmatprep.subr.bf16.mxu0 %v1186
    %1662 = vmatpush1.bf16.msra.mxu0 %v1185
    %1663 = vmatprep.subr.bf16.mxu0 %v1178
    %1664 = vmatpush1.bf16.msra.mxu0 %v1177
    %1665 = vmatprep.subr.bf16.mxu0 %v1170
    %1666 = vmatpush1.bf16.msra.mxu0 %v1169
    %1667 = vmatprep.subr.bf16.mxu0 %v1162
    %1668 = vmatpush1.bf16.msra.mxu0 %v1161
    %1669 = vmatprep.subr.bf16.mxu0 %v1154
    %1670 = vmatpush1.bf16.msra.mxu0 %v1153
    %1671 = vmatprep.subr.bf16.mxu0 %v1146
    %1672 = vmatpush1.bf16.msra.mxu0 %v1145
    %1673 = vmatprep.subr.bf16.mxu0 %v1266
    %1674 = vmatpush2.bf16.msra.mxu0 %v1265
    %1675 = vmatprep.subr.bf16.mxu0 %v1258
    %1676 = vmatpush2.bf16.msra.mxu0 %v1257
    %1677 = vmatprep.subr.bf16.mxu0 %v1250
    %1678 = vmatpush2.bf16.msra.mxu0 %v1249
    %1679 = vmatprep.subr.bf16.mxu0 %v1242
    %1680 = vmatpush2.bf16.msra.mxu0 %v1241
    %1681 = vmatprep.subr.bf16.mxu0 %v1234
    %1682 = vmatpush2.bf16.msra.mxu0 %v1233
    %1683 = vmatprep.subr.bf16.mxu0 %v1226
    %1684 = vmatpush2.bf16.msra.mxu0 %v1225
    %1685 = vmatprep.subr.bf16.mxu0 %v1218
    %1686 = vmatpush2.bf16.msra.mxu0 %v1217
    %1687 = vmatprep.subr.bf16.mxu0 %v1210
    %1688 = vmatpush2.bf16.msra.mxu0 %v1209
    %1689 = vmatprep.mubr.bf16.mxu0 %v76
    %1690 = vmatmul.mubr.bf16.gmra.mxu0 %v75
    %v1691 = vpop.f32.mrf.mxu0
    %v1692 = vadd.f32 %v340, %v1691
    %v1693 = vpop.f32.mrf.mxu0
    %v1694 = vadd.f32 %v344, %v1693
    %v1695 = vpop.f32.mrf.mxu0
    %v1696 = vpop.f32.mrf.mxu0
    %1697 = vdwg.mxu0
    %1698 = vmatprep.subr.bf16.mxu0 %v1330
    %1699 = vmatpush1.bf16.msra.mxu0 %v1329
    %1700 = vmatprep.subr.bf16.mxu0 %v1322
    %1701 = vmatpush1.bf16.msra.mxu0 %v1321
    %1702 = vmatprep.subr.bf16.mxu0 %v1314
    %1703 = vmatpush1.bf16.msra.mxu0 %v1313
    %1704 = vmatprep.subr.bf16.mxu0 %v1306
    %1705 = vmatpush1.bf16.msra.mxu0 %v1305
    %1706 = vmatprep.subr.bf16.mxu0 %v1298
    %1707 = vmatpush1.bf16.msra.mxu0 %v1297
    %1708 = vmatprep.subr.bf16.mxu0 %v1290
    %1709 = vmatpush1.bf16.msra.mxu0 %v1289
    %1710 = vmatprep.subr.bf16.mxu0 %v1282
    %1711 = vmatpush1.bf16.msra.mxu0 %v1281
    %1712 = vmatprep.subr.bf16.mxu0 %v1274
    %1713 = vmatpush1.bf16.msra.mxu0 %v1273
    %1714 = vmatprep.subr.bf16.mxu0 %v1394
    %1715 = vmatpush2.bf16.msra.mxu0 %v1393
    %1716 = vmatprep.subr.bf16.mxu0 %v1386
    %1717 = vmatpush2.bf16.msra.mxu0 %v1385
    %1718 = vmatprep.subr.bf16.mxu0 %v1378
    %1719 = vmatpush2.bf16.msra.mxu0 %v1377
    %1720 = vmatprep.subr.bf16.mxu0 %v1370
    %1721 = vmatpush2.bf16.msra.mxu0 %v1369
    %1722 = vmatprep.subr.bf16.mxu0 %v1362
    %1723 = vmatpush2.bf16.msra.mxu0 %v1361
    %1724 = vmatprep.subr.bf16.mxu0 %v1354
    %1725 = vmatpush2.bf16.msra.mxu0 %v1353
    %1726 = vmatprep.subr.bf16.mxu0 %v1346
    %1727 = vmatpush2.bf16.msra.mxu0 %v1345
    %1728 = vmatprep.subr.bf16.mxu0 %v1338
    %1729 = vmatpush2.bf16.msra.mxu0 %v1337
    %1730 = vmatprep.mubr.bf16.mxu0 %v78
    %1731 = vmatmul.mubr.bf16.gmra.mxu0 %v77
    %v1732 = vpop.f32.mrf.mxu0
    %v1733 = vadd.f32 %v1692, %v1732
    %v1734 = vpop.f32.mrf.mxu0
    %v1735 = vadd.f32 %v1694, %v1734
    %v1736 = vpop.f32.mrf.mxu0
    %v1737 = vpop.f32.mrf.mxu0
    %1738 = vdwg.mxu0
    %1739 = vmatprep.subr.bf16.mxu0 %v1204
    %1740 = vmatpush1.bf16.msra.mxu0 %v1203
    %1741 = vmatprep.subr.bf16.mxu0 %v1196
    %1742 = vmatpush1.bf16.msra.mxu0 %v1195
    %1743 = vmatprep.subr.bf16.mxu0 %v1188
    %1744 = vmatpush1.bf16.msra.mxu0 %v1187
    %1745 = vmatprep.subr.bf16.mxu0 %v1180
    %1746 = vmatpush1.bf16.msra.mxu0 %v1179
    %1747 = vmatprep.subr.bf16.mxu0 %v1172
    %1748 = vmatpush1.bf16.msra.mxu0 %v1171
    %1749 = vmatprep.subr.bf16.mxu0 %v1164
    %1750 = vmatpush1.bf16.msra.mxu0 %v1163
    %1751 = vmatprep.subr.bf16.mxu0 %v1156
    %1752 = vmatpush1.bf16.msra.mxu0 %v1155
    %1753 = vmatprep.subr.bf16.mxu0 %v1148
    %1754 = vmatpush1.bf16.msra.mxu0 %v1147
    %1755 = vmatprep.subr.bf16.mxu0 %v1268
    %1756 = vmatpush2.bf16.msra.mxu0 %v1267
    %1757 = vmatprep.subr.bf16.mxu0 %v1260
    %1758 = vmatpush2.bf16.msra.mxu0 %v1259
    %1759 = vmatprep.subr.bf16.mxu0 %v1252
    %1760 = vmatpush2.bf16.msra.mxu0 %v1251
    %1761 = vmatprep.subr.bf16.mxu0 %v1244
    %1762 = vmatpush2.bf16.msra.mxu0 %v1243
    %1763 = vmatprep.subr.bf16.mxu0 %v1236
    %1764 = vmatpush2.bf16.msra.mxu0 %v1235
    %1765 = vmatprep.subr.bf16.mxu0 %v1228
    %1766 = vmatpush2.bf16.msra.mxu0 %v1227
    %1767 = vmatprep.subr.bf16.mxu0 %v1220
    %1768 = vmatpush2.bf16.msra.mxu0 %v1219
    %1769 = vmatprep.subr.bf16.mxu0 %v1212
    %1770 = vmatpush2.bf16.msra.mxu0 %v1211
    %1771 = vmatprep.mubr.bf16.mxu0 %v76
    %1772 = vmatmul.mubr.bf16.gmra.mxu0 %v75
    %v1773 = vpop.f32.mrf.mxu0
    %v1774 = vadd.f32 %v348, %v1773
    %v1775 = vpop.f32.mrf.mxu0
    %v1776 = vadd.f32 %v352, %v1775
    %v1777 = vpop.f32.mrf.mxu0
    %v1778 = vpop.f32.mrf.mxu0
    %1779 = vdwg.mxu0
    %1780 = vmatprep.subr.bf16.mxu0 %v1332
    %1781 = vmatpush1.bf16.msra.mxu0 %v1331
    %1782 = vmatprep.subr.bf16.mxu0 %v1324
    %1783 = vmatpush1.bf16.msra.mxu0 %v1323
    %1784 = vmatprep.subr.bf16.mxu0 %v1316
    %1785 = vmatpush1.bf16.msra.mxu0 %v1315
    %1786 = vmatprep.subr.bf16.mxu0 %v1308
    %1787 = vmatpush1.bf16.msra.mxu0 %v1307
    %1788 = vmatprep.subr.bf16.mxu0 %v1300
    %1789 = vmatpush1.bf16.msra.mxu0 %v1299
    %1790 = vmatprep.subr.bf16.mxu0 %v1292
    %1791 = vmatpush1.bf16.msra.mxu0 %v1291
    %1792 = vmatprep.subr.bf16.mxu0 %v1284
    %1793 = vmatpush1.bf16.msra.mxu0 %v1283
    %1794 = vmatprep.subr.bf16.mxu0 %v1276
    %1795 = vmatpush1.bf16.msra.mxu0 %v1275
    %1796 = vmatprep.subr.bf16.mxu0 %v1396
    %1797 = vmatpush2.bf16.msra.mxu0 %v1395
    %1798 = vmatprep.subr.bf16.mxu0 %v1388
    %1799 = vmatpush2.bf16.msra.mxu0 %v1387
    %1800 = vmatprep.subr.bf16.mxu0 %v1380
    %1801 = vmatpush2.bf16.msra.mxu0 %v1379
    %1802 = vmatprep.subr.bf16.mxu0 %v1372
    %1803 = vmatpush2.bf16.msra.mxu0 %v1371
    %1804 = vmatprep.subr.bf16.mxu0 %v1364
    %1805 = vmatpush2.bf16.msra.mxu0 %v1363
    %1806 = vmatprep.subr.bf16.mxu0 %v1356
    %1807 = vmatpush2.bf16.msra.mxu0 %v1355
    %1808 = vmatprep.subr.bf16.mxu0 %v1348
    %1809 = vmatpush2.bf16.msra.mxu0 %v1347
    %1810 = vmatprep.subr.bf16.mxu0 %v1340
    %1811 = vmatpush2.bf16.msra.mxu0 %v1339
    %1812 = vmatprep.mubr.bf16.mxu0 %v78
    %1813 = vmatmul.mubr.bf16.gmra.mxu0 %v77
    %v1814 = vpop.f32.mrf.mxu0
    %v1815 = vadd.f32 %v1774, %v1814
    %v1816 = vpop.f32.mrf.mxu0
    %v1817 = vadd.f32 %v1776, %v1816
    %v1818 = vpop.f32.mrf.mxu0
    %v1819 = vpop.f32.mrf.mxu0
    %1820 = vdwg.mxu0
    %1821 = vmatprep.subr.bf16.mxu0 %v1206
    %1822 = vmatpush1.bf16.msra.mxu0 %v1205
    %1823 = vmatprep.subr.bf16.mxu0 %v1198
    %1824 = vmatpush1.bf16.msra.mxu0 %v1197
    %1825 = vmatprep.subr.bf16.mxu0 %v1190
    %1826 = vmatpush1.bf16.msra.mxu0 %v1189
    %1827 = vmatprep.subr.bf16.mxu0 %v1182
    %1828 = vmatpush1.bf16.msra.mxu0 %v1181
    %1829 = vmatprep.subr.bf16.mxu0 %v1174
    %1830 = vmatpush1.bf16.msra.mxu0 %v1173
    %1831 = vmatprep.subr.bf16.mxu0 %v1166
    %1832 = vmatpush1.bf16.msra.mxu0 %v1165
    %1833 = vmatprep.subr.bf16.mxu0 %v1158
    %1834 = vmatpush1.bf16.msra.mxu0 %v1157
    %1835 = vmatprep.subr.bf16.mxu0 %v1150
    %1836 = vmatpush1.bf16.msra.mxu0 %v1149
    %1837 = vmatprep.subr.bf16.mxu0 %v1270
    %1838 = vmatpush2.bf16.msra.mxu0 %v1269
    %1839 = vmatprep.subr.bf16.mxu0 %v1262
    %1840 = vmatpush2.bf16.msra.mxu0 %v1261
    %1841 = vmatprep.subr.bf16.mxu0 %v1254
    %1842 = vmatpush2.bf16.msra.mxu0 %v1253
    %1843 = vmatprep.subr.bf16.mxu0 %v1246
    %1844 = vmatpush2.bf16.msra.mxu0 %v1245
    %1845 = vmatprep.subr.bf16.mxu0 %v1238
    %1846 = vmatpush2.bf16.msra.mxu0 %v1237
    %1847 = vmatprep.subr.bf16.mxu0 %v1230
    %1848 = vmatpush2.bf16.msra.mxu0 %v1229
    %1849 = vmatprep.subr.bf16.mxu0 %v1222
    %1850 = vmatpush2.bf16.msra.mxu0 %v1221
    %1851 = vmatprep.subr.bf16.mxu0 %v1214
    %1852 = vmatpush2.bf16.msra.mxu0 %v1213
    %1853 = vmatprep.mubr.bf16.mxu0 %v76
    %1854 = vmatmul.mubr.bf16.gmra.mxu0 %v75
    %v1855 = vpop.f32.mrf.mxu0
    %v1856 = vadd.f32 %v356, %v1855
    %v1857 = vpop.f32.mrf.mxu0
    %v1858 = vadd.f32 %v360, %v1857
    %v1859 = vpop.f32.mrf.mxu0
    %v1860 = vpop.f32.mrf.mxu0
    %1861 = vdwg.mxu0
    %1862 = vmatprep.subr.bf16.mxu0 %v1334
    %1863 = vmatpush1.bf16.msra.mxu0 %v1333
    %1864 = vmatprep.subr.bf16.mxu0 %v1326
    %1865 = vmatpush1.bf16.msra.mxu0 %v1325
    %1866 = vmatprep.subr.bf16.mxu0 %v1318
    %1867 = vmatpush1.bf16.msra.mxu0 %v1317
    %1868 = vmatprep.subr.bf16.mxu0 %v1310
    %1869 = vmatpush1.bf16.msra.mxu0 %v1309
    %1870 = vmatprep.subr.bf16.mxu0 %v1302
    %1871 = vmatpush1.bf16.msra.mxu0 %v1301
    %1872 = vmatprep.subr.bf16.mxu0 %v1294
    %1873 = vmatpush1.bf16.msra.mxu0 %v1293
    %1874 = vmatprep.subr.bf16.mxu0 %v1286
    %1875 = vmatpush1.bf16.msra.mxu0 %v1285
    %1876 = vmatprep.subr.bf16.mxu0 %v1278
    %1877 = vmatpush1.bf16.msra.mxu0 %v1277
    %1878 = vmatprep.subr.bf16.mxu0 %v1398
    %1879 = vmatpush2.bf16.msra.mxu0 %v1397
    %1880 = vmatprep.subr.bf16.mxu0 %v1390
    %1881 = vmatpush2.bf16.msra.mxu0 %v1389
    %1882 = vmatprep.subr.bf16.mxu0 %v1382
    %1883 = vmatpush2.bf16.msra.mxu0 %v1381
    %1884 = vmatprep.subr.bf16.mxu0 %v1374
    %1885 = vmatpush2.bf16.msra.mxu0 %v1373
    %1886 = vmatprep.subr.bf16.mxu0 %v1366
    %1887 = vmatpush2.bf16.msra.mxu0 %v1365
    %1888 = vmatprep.subr.bf16.mxu0 %v1358
    %1889 = vmatpush2.bf16.msra.mxu0 %v1357
    %1890 = vmatprep.subr.bf16.mxu0 %v1350
    %1891 = vmatpush2.bf16.msra.mxu0 %v1349
    %1892 = vmatprep.subr.bf16.mxu0 %v1342
    %1893 = vmatpush2.bf16.msra.mxu0 %v1341
    %1894 = vmatprep.mubr.bf16.mxu0 %v78
    %1895 = vmatmul.mubr.bf16.gmra.mxu0 %v77
    %v1896 = vpop.f32.mrf.mxu0
    %v1897 = vadd.f32 %v1856, %v1896
    %v1898 = vpop.f32.mrf.mxu0
    %v1899 = vadd.f32 %v1858, %v1898
    %v1900 = vpop.f32.mrf.mxu0
    %v1901 = vpop.f32.mrf.mxu0
    %1902 = vdwg.mxu0
    %1903 = vmatprep.subr.bf16.mxu0 %v1208
    %1904 = vmatpush1.bf16.msra.mxu0 %v1207
    %1905 = vmatprep.subr.bf16.mxu0 %v1200
    %1906 = vmatpush1.bf16.msra.mxu0 %v1199
    %1907 = vmatprep.subr.bf16.mxu0 %v1192
    %1908 = vmatpush1.bf16.msra.mxu0 %v1191
    %1909 = vmatprep.subr.bf16.mxu0 %v1184
    %1910 = vmatpush1.bf16.msra.mxu0 %v1183
    %1911 = vmatprep.subr.bf16.mxu0 %v1176
    %1912 = vmatpush1.bf16.msra.mxu0 %v1175
    %1913 = vmatprep.subr.bf16.mxu0 %v1168
    %1914 = vmatpush1.bf16.msra.mxu0 %v1167
    %1915 = vmatprep.subr.bf16.mxu0 %v1160
    %1916 = vmatpush1.bf16.msra.mxu0 %v1159
    %1917 = vmatprep.subr.bf16.mxu0 %v1152
    %1918 = vmatpush1.bf16.msra.mxu0 %v1151
    %1919 = vmatprep.subr.bf16.mxu0 %v1272
    %1920 = vmatpush2.bf16.msra.mxu0 %v1271
    %1921 = vmatprep.subr.bf16.mxu0 %v1264
    %1922 = vmatpush2.bf16.msra.mxu0 %v1263
    %1923 = vmatprep.subr.bf16.mxu0 %v1256
    %1924 = vmatpush2.bf16.msra.mxu0 %v1255
    %1925 = vmatprep.subr.bf16.mxu0 %v1248
    %1926 = vmatpush2.bf16.msra.mxu0 %v1247
    %1927 = vmatprep.subr.bf16.mxu0 %v1240
    %1928 = vmatpush2.bf16.msra.mxu0 %v1239
    %1929 = vmatprep.subr.bf16.mxu0 %v1232
    %1930 = vmatpush2.bf16.msra.mxu0 %v1231
    %1931 = vmatprep.subr.bf16.mxu0 %v1224
    %1932 = vmatpush2.bf16.msra.mxu0 %v1223
    %1933 = vmatprep.subr.bf16.mxu0 %v1216
    %1934 = vmatpush2.bf16.msra.mxu0 %v1215
    %1935 = vmatprep.mubr.bf16.mxu0 %v76
    %1936 = vmatmul.mubr.bf16.gmra.mxu0 %v75
    %v1937 = vpop.f32.mrf.mxu0
    %v1938 = vadd.f32 %v364, %v1937
    %v1939 = vpop.f32.mrf.mxu0
    %v1940 = vadd.f32 %v368, %v1939
    %v1941 = vpop.f32.mrf.mxu0
    %v1942 = vpop.f32.mrf.mxu0
    %1943 = vdwg.mxu0
    %1944 = vmatprep.subr.bf16.mxu0 %v1336
    %1945 = vmatpush1.bf16.msra.mxu0 %v1335
    %1946 = vmatprep.subr.bf16.mxu0 %v1328
    %1947 = vmatpush1.bf16.msra.mxu0 %v1327
    %1948 = vmatprep.subr.bf16.mxu0 %v1320
    %1949 = vmatpush1.bf16.msra.mxu0 %v1319
    %1950 = vmatprep.subr.bf16.mxu0 %v1312
    %1951 = vmatpush1.bf16.msra.mxu0 %v1311
    %1952 = vmatprep.subr.bf16.mxu0 %v1304
    %1953 = vmatpush1.bf16.msra.mxu0 %v1303
    %1954 = vmatprep.subr.bf16.mxu0 %v1296
    %1955 = vmatpush1.bf16.msra.mxu0 %v1295
    %1956 = vmatprep.subr.bf16.mxu0 %v1288
    %1957 = vmatpush1.bf16.msra.mxu0 %v1287
    %1958 = vmatprep.subr.bf16.mxu0 %v1280
    %1959 = vmatpush1.bf16.msra.mxu0 %v1279
    %1960 = vmatprep.subr.bf16.mxu0 %v1400
    %1961 = vmatpush2.bf16.msra.mxu0 %v1399
    %1962 = vmatprep.subr.bf16.mxu0 %v1392
    %1963 = vmatpush2.bf16.msra.mxu0 %v1391
    %1964 = vmatprep.subr.bf16.mxu0 %v1384
    %1965 = vmatpush2.bf16.msra.mxu0 %v1383
    %1966 = vmatprep.subr.bf16.mxu0 %v1376
    %1967 = vmatpush2.bf16.msra.mxu0 %v1375
    %1968 = vmatprep.subr.bf16.mxu0 %v1368
    %1969 = vmatpush2.bf16.msra.mxu0 %v1367
    %1970 = vmatprep.subr.bf16.mxu0 %v1360
    %1971 = vmatpush2.bf16.msra.mxu0 %v1359
    %1972 = vmatprep.subr.bf16.mxu0 %v1352
    %1973 = vmatpush2.bf16.msra.mxu0 %v1351
    %1974 = vmatprep.subr.bf16.mxu0 %v1344
    %1975 = vmatpush2.bf16.msra.mxu0 %v1343
    %1976 = vmatprep.mubr.bf16.mxu0 %v78
    %1977 = vmatmul.mubr.bf16.gmra.mxu0 %v77
    %v1978 = vpop.f32.mrf.mxu0
    %v1979 = vadd.f32 %v1938, %v1978
    %v1980 = vpop.f32.mrf.mxu0
    %v1981 = vadd.f32 %v1940, %v1980
    %v1982 = vpop.f32.mrf.mxu0
    %v1983 = vpop.f32.mrf.mxu0
    %1984 = vdwg.mxu0
    %vm1985 = vcmp.gt.f32.partialorder %v1733, 0.0
    %vm1986 = vcmp.gt.f32.partialorder %v1735, 0.0
    %vm1987 = vcmp.gt.f32.partialorder %v1815, 0.0
    %vm1988 = vcmp.gt.f32.partialorder %v1817, 0.0
    %vm1989 = vcmp.gt.f32.partialorder %v1897, 0.0
    %vm1990 = vcmp.gt.f32.partialorder %v1899, 0.0
    %vm1991 = vcmp.gt.f32.partialorder %v1979, 0.0
    %vm1992 = vcmp.gt.f32.partialorder %v1981, 0.0
    %v1993 = vmul.f32 %v1733, 0.01
    %v1994 = vmul.f32 %v1735, 0.01
    %v1995 = vmul.f32 %v1815, 0.01
    %v1996 = vmul.f32 %v1817, 0.01
    %v1997 = vmul.f32 %v1897, 0.01
    %v1998 = vmul.f32 %v1899, 0.01
    %v1999 = vmul.f32 %v1979, 0.01
    %v2000 = vmul.f32 %v1981, 0.01
    %v2001 = vsel %vm1985, %v1733, %v1993
    %v2002 = vsel %vm1986, %v1735, %v1994
    %v2003 = vsel %vm1987, %v1815, %v1995
    %v2004 = vsel %vm1988, %v1817, %v1996
    %v2005 = vsel %vm1989, %v1897, %v1997
    %v2006 = vsel %vm1990, %v1899, %v1998
    %v2007 = vsel %vm1991, %v1979, %v1999
    %v2008 = vsel %vm1992, %v1981, %v2000
    %v2009 = vld [vmem:[#allocation8] sm:$0xff]
    %v2010 = vunpack.c.l.bf16 %v2009
    %v2011 = vunpack.c.h.bf16 %v2009
    %v2014 = vlaneseq
    %v2015 = vshrl.u32 %v2014, 7
    %v2016 = vsub.s32 0, %v2015
    %v2017 = vrot.slane %v2010, %v2016
    %v2018 = vlaneseq
    %v2019 = vshrl.u32 %v2018, 7
    %v2020 = vsub.s32 2, %v2019
    %v2021 = vrot.slane %v2010, %v2020
    %v2022 = vlaneseq
    %v2023 = vshrl.u32 %v2022, 7
    %v2024 = vsub.s32 4, %v2023
    %v2025 = vrot.slane %v2010, %v2024
    %v2026 = vlaneseq
    %v2027 = vshrl.u32 %v2026, 7
    %v2028 = vsub.s32 6, %v2027
    %v2029 = vrot.slane %v2010, %v2028
    %v2030 = vlaneseq
    %v2031 = vshrl.u32 %v2030, 7
    %v2032 = vsub.s32 0, %v2031
    %v2033 = vrot.slane %v2011, %v2032
    %v2034 = vlaneseq
    %v2035 = vshrl.u32 %v2034, 7
    %v2036 = vsub.s32 2, %v2035
    %v2037 = vrot.slane %v2011, %v2036
    %v2038 = vlaneseq
    %v2039 = vshrl.u32 %v2038, 7
    %v2040 = vsub.s32 4, %v2039
    %v2041 = vrot.slane %v2011, %v2040
    %v2042 = vlaneseq
    %v2043 = vshrl.u32 %v2042, 7
    %v2044 = vsub.s32 6, %v2043
    %v2045 = vrot.slane %v2011, %v2044
    %v2054 = vlaneseq
    %v2055 = vshrl.u32 %v2054, 7
    %v2056 = vsub.s32 0, %v2055
    %v2057 = vrot.slane %v2017, %v2056
    %v2058 = vlaneseq
    %v2059 = vshrl.u32 %v2058, 7
    %v2060 = vsub.s32 0, %v2059
    %v2061 = vrot.slane %v2021, %v2060
    %v2062 = vlaneseq
    %v2063 = vshrl.u32 %v2062, 7
    %v2064 = vsub.s32 0, %v2063
    %v2065 = vrot.slane %v2025, %v2064
    %v2066 = vlaneseq
    %v2067 = vshrl.u32 %v2066, 7
    %v2068 = vsub.s32 0, %v2067
    %v2069 = vrot.slane %v2029, %v2068
    %v2070 = vlaneseq
    %v2071 = vshrl.u32 %v2070, 7
    %v2072 = vsub.s32 0, %v2071
    %v2073 = vrot.slane %v2033, %v2072
    %v2074 = vlaneseq
    %v2075 = vshrl.u32 %v2074, 7
    %v2076 = vsub.s32 0, %v2075
    %v2077 = vrot.slane %v2037, %v2076
    %v2078 = vlaneseq
    %v2079 = vshrl.u32 %v2078, 7
    %v2080 = vsub.s32 0, %v2079
    %v2081 = vrot.slane %v2041, %v2080
    %v2082 = vlaneseq
    %v2083 = vshrl.u32 %v2082, 7
    %v2084 = vsub.s32 0, %v2083
    %v2085 = vrot.slane %v2045, %v2084
    %v2086 = vmul.f32 %v2001, %v2057
    %v2087 = vmul.f32 %v2002, %v2061
    %v2088 = vmul.f32 %v2003, %v2065
    %v2089 = vmul.f32 %v2004, %v2069
    %v2090 = vmul.f32 %v2005, %v2073
    %v2091 = vmul.f32 %v2006, %v2077
    %v2092 = vmul.f32 %v2007, %v2081
    %v2093 = vmul.f32 %v2008, %v2085
    %v2094 = vadd.f32 %v2086, %v2087
    %v2095 = vadd.f32 %v2094, %v2088
    %v2096 = vadd.f32 %v2095, %v2089
    %v2097 = vadd.f32 %v2096, %v2090
    %v2098 = vadd.f32 %v2097, %v2091
    %v2099 = vadd.f32 %v2098, %v2092
    %v2100 = vadd.f32 %v2099, %v2093
    %2101 = vadd.xlane.f32.xlu0 %v2100
    %v2102 = vpop.xlane.xlu0 %2101
    %v2103 = vld [vmem:[#allocation2] sm:$0x1]
    %v2105 = vlaneseq
    %v2106 = vshrl.u32 %v2105, 7
    %v2107 = vsub.s32 0, %v2106
    %v2108 = vrot.slane %v2103, %v2107
    %v2110 = vadd.f32 %v2102, %v2108
    %vm2111 = vcmask 7168
    %2112 = vst.msk [vmem:[%s5] sm:$0xff] %vm2111, %v2110
    // Predicated region
    $region38: #{discriminator1_forward.1} parent=1 // pred_check
      _
    $region39: #{discriminator1_forward.1} parent=1 // pred_check_branch
      %2114 = sbr.rel (0) target = $region41
    $region40: #{discriminator1_forward.1} parent=1 // pred_region
      _
    $region41: #{discriminator1_forward.1} parent=1 // pred_fallthru
      _
    // Predicated region
    $region42: #{discriminator1_forward.1} parent=1 // pred_check
      _
    $region43: #{discriminator1_forward.1} parent=1 // pred_check_branch
      %2116 = sbr.rel (0) target = $region45
    $region44: #{discriminator1_forward.1} parent=1 // pred_region
      _
    $region45: #{discriminator1_forward.1} parent=1 // pred_fallthru
      _
    %2117 = vsyncpa [#allocation4], 1
    %2118 = vsyncpa [#allocation6], 1
    %2119 = vsyncpa [#allocation9], 1

</llo_original>
